<compile_context>
chip_gen: v6e
topology: v6e:2x2x1
jax: 0.10.0
libtpu: 0.0.40
codegen_flags: <defaults>
</compile_context>

<pallas_src>
import functools

import jax
import jax.numpy as jnp
from jax.experimental import pallas as pl
from jax.experimental.pallas import tpu as pltpu


# ----------------------------- kernels --------------------------------------
def _conv_block_kernel(aprev_ref, acur_ref, anext_ref, w_ref, scale_ref,
                       shift_ref, c_ref, stats_ref, *, row_tile,
                       tiles_per_image, apply_affine, apply_relu):
    """(optional affine+ReLU of the input) -> 3x3 conv -> partial BN stats.

    aprev_ref : (8, W*Ci)         8-row block holding the row above the tile
    acur_ref  : (row_tile, W*Ci)  current row tile
    anext_ref : (8, W*Ci)         8-row block holding the row below the tile
    w_ref     : (3, W*Ci, W*Co)   banded conv weights (one matrix per dy)
    scale_ref : (1, W*Ci)         per-(x, channel) BN scale of the *input*
    shift_ref : (1, W*Ci)         per-(x, channel) BN shift of the *input*
    c_ref     : (row_tile, W*Co)  raw (pre-BN) conv output, lane-dense
    stats_ref : (1, 2, W*Co)      per-tile [sum; sum-of-squares] of the output
    """
    i = pl.program_id(1)  # row-tile index within the current image

    def norm(v):
        if apply_affine:
            v = v * scale_ref[...] + shift_ref[...]
        if apply_relu:
            v = jnp.maximum(v, 0.0)
        return v

    # Halo rows; out-of-image rows are zeroed *after* normalization, which is
    # exactly the conv's zero padding of its (normalized) input.
    top = jnp.where(i == 0, 0.0, norm(aprev_ref[7:8, :]))
    bot = jnp.where(i == tiles_per_image - 1, 0.0, norm(anext_ref[0:1, :]))
    mid = norm(acur_ref[...])
    xwin = jnp.concatenate([top, mid, bot], axis=0)      # (row_tile+2, W*Ci)

    # 3x3 conv == 3 banded MXU matmuls (dy = 0, 1, 2); x-padding is in bands.
    acc = jnp.dot(xwin[0:row_tile], w_ref[0],
                  preferred_element_type=jnp.float32)
    acc = acc + jnp.dot(xwin[1:row_tile + 1], w_ref[1],
                        preferred_element_type=jnp.float32)
    acc = acc + jnp.dot(xwin[2:row_tile + 2], w_ref[2],
                        preferred_element_type=jnp.float32)
    c_ref[...] = acc

    # Per-tile partial BatchNorm statistics (lane = (x, channel); reduced over
    # tiles and x in the wrapper): row 0 = sum, row 1 = sum of squares.
    part = jnp.concatenate([jnp.sum(acc, axis=0, keepdims=True),
                            jnp.sum(acc * acc, axis=0, keepdims=True)], axis=0)
    stats_ref[...] = part.reshape(1, 2, part.shape[-1])


def _bn_relu_kernel(c_ref, scale_ref, shift_ref, o_ref):
    o_ref[...] = jnp.maximum(c_ref[...] * scale_ref[...] + shift_ref[...], 0.0)


# ----------------------------- wrappers --------------------------------------
def _banded_conv_weights(w_hwio, W):
    """(3, 3, Ci, Co) conv weights -> (3, W*Ci, W*Co) banded matrices.

    band[dy][xi*Ci+ci, xo*Co+co] = w[dy, xi-xo+1, ci, co] (0 if |xi-xo| > 1),
    so each dy term of the 3x3 conv is one lane-dense MXU matmul over a
    (rows, W*Ci) activation slab, with the x zero-padding built in.
    """
    w_hwio = w_hwio.astype(jnp.float32)
    Ci, Co = w_hwio.shape[2], w_hwio.shape[3]
    bands = []
    for dy in range(3):
        m = jnp.zeros((W * Ci, W * Co), jnp.float32)
        for dx in range(3):
            m = m + jnp.kron(jnp.eye(W, k=1 - dx, dtype=jnp.float32),
                             w_hwio[dy, dx])
        bands.append(m)
    return jnp.stack(bands, axis=0)


def _pick_row_tile(H):
    best = 0
    for t in range(8, min(H, 256) + 1, 8):
        if H % t == 0:
            best = t
    if best == 0:
        # TODO(synk): support H not a multiple of 8 via a masked last tile.
        raise ValueError(f"H must be a multiple of 8 for this kernel, got {H}")
    return best


def _conv3x3_rowslab(a2d, bands, scale_row, shift_row, *, N, H, W, Ci, Co,
                     row_tile, apply_affine, apply_relu):
    """Raw 3x3 conv over a lane-dense (N*H, W*Ci) activation slab.

    Returns (conv output (N*H, W*Co), per-tile stats (num_tiles, 2, W*Co)).
    """
    WCi, WCo = W * Ci, W * Co
    T = H // row_tile
    n_tiles = N * T
    blocks8 = (N * H) // 8  # number of 8-row blocks in the activation

    def cur_map(n, i):
        return (n * T + i, 0)

    def prev_map(n, i):  # 8-row block that contains the row above the tile
        g = n * T + i
        return (jnp.maximum(g * (row_tile // 8) - 1, 0), 0)

    def next_map(n, i):  # 8-row block that contains the row below the tile
        g = n * T + i
        return (jnp.minimum((g + 1) * (row_tile // 8), blocks8 - 1), 0)

    kernel = functools.partial(
        _conv_block_kernel, row_tile=row_tile, tiles_per_image=T,
        apply_affine=apply_affine, apply_relu=apply_relu)

    flops = 2 * N * H * 3 * WCi * WCo
    bytes_accessed = 4 * (2 * N * H * WCi + 3 * WCi * WCo + N * H * WCo
                          + n_tiles * 2 * WCo)

    return pl.pallas_call(
        kernel,
        grid=(N, T),
        in_specs=[
            pl.BlockSpec((8, WCi), prev_map),
            pl.BlockSpec((row_tile, WCi), cur_map),
            pl.BlockSpec((8, WCi), next_map),
            pl.BlockSpec((3, WCi, WCo), lambda n, i: (0, 0, 0)),
            pl.BlockSpec((1, WCi), lambda n, i: (0, 0)),
            pl.BlockSpec((1, WCi), lambda n, i: (0, 0)),
        ],
        out_specs=[
            pl.BlockSpec((row_tile, WCo), cur_map),
            pl.BlockSpec((1, 2, WCo), lambda n, i: (n * T + i, 0, 0)),
        ],
        out_shape=[
            jax.ShapeDtypeStruct((N * H, WCo), jnp.float32),
            jax.ShapeDtypeStruct((n_tiles, 2, WCo), jnp.float32),
        ],
        compiler_params=pltpu.CompilerParams(
            dimension_semantics=("parallel", "parallel"),
            vmem_limit_bytes=32 * 1024 * 1024),
        cost_estimate=pl.CostEstimate(flops=flops, transcendentals=0,
                                      bytes_accessed=bytes_accessed),
    )(a2d, a2d, a2d, bands, scale_row, shift_row)


def _bn_relu_rowslab(c2d, scale_row, shift_row, *, row_tile):
    rows, lanes = c2d.shape
    T = rows // row_tile
    return pl.pallas_call(
        _bn_relu_kernel,
        grid=(T,),
        in_specs=[pl.BlockSpec((row_tile, lanes), lambda g: (g, 0)),
                  pl.BlockSpec((1, lanes), lambda g: (0, 0)),
                  pl.BlockSpec((1, lanes), lambda g: (0, 0))],
        out_specs=pl.BlockSpec((row_tile, lanes), lambda g: (g, 0)),
        out_shape=jax.ShapeDtypeStruct((rows, lanes), jnp.float32),
        compiler_params=pltpu.CompilerParams(
            dimension_semantics=("parallel",),
            vmem_limit_bytes=32 * 1024 * 1024),
    )(c2d, scale_row, shift_row)


def _bn_scale_shift(stats, gamma, beta, *, count, W, C, eps):
    """Per-tile [sum; sumsq] partials -> per-channel BN scale/shift."""
    s = stats.sum(axis=0).reshape(2, W, C).sum(axis=1)   # (2, C)
    mean = s[0] / count
    var = s[1] / count - mean * mean                     # biased variance
    scale = gamma.astype(jnp.float32) * jax.lax.rsqrt(var + eps)
    shift = beta.astype(jnp.float32) - mean * scale
    return scale, shift


def _lane_row(v, W):
    """Per-channel (C,) -> (1, W*C) row matching the (x, channel) lane layout."""
    return jnp.tile(v.astype(jnp.float32), W)[None, :]


def double_conv_forward(x_nchw, params, *, eps=1e-5, row_tile=None):
    """Matches double_conv.forward: (conv3x3 => BN => ReLU) * 2, NCHW in/out.

    BatchNorm2d is in its default training-mode forward: per-channel batch
    statistics over (N, H, W) with biased variance.  The conv bias is omitted
    because the BN mean subtraction cancels it exactly (running-stat updates
    have no effect on the forward output and are not modeled).
    """
    N, Cin, H, W = x_nchw.shape
    w1 = params["w1"].astype(jnp.float32)   # (3, 3, Cin,  Cout) HWIO
    w2 = params["w2"].astype(jnp.float32)   # (3, 3, Cout, Cout) HWIO
    Cout = w1.shape[-1]
    if row_tile is None:
        row_tile = _pick_row_tile(H)
    assert H % row_tile == 0 and row_tile % 8 == 0, (H, row_tile)

    # NCHW -> lane-dense row slabs (N*H, W*C) (reshape after transpose is free).
    a = jnp.transpose(x_nchw, (0, 2, 3, 1)).astype(jnp.float32)
    a = a.reshape(N * H, W * Cin)

    count = N * H * W
    common = dict(N=N, H=H, W=W, row_tile=row_tile)

    # Block 1: raw conv1 + partial BN statistics.
    c1, st1 = _conv3x3_rowslab(
        a, _banded_conv_weights(w1, W),
        jnp.ones((1, W * Cin), jnp.float32),
        jnp.zeros((1, W * Cin), jnp.float32),
        Ci=Cin, Co=Cout, apply_affine=False, apply_relu=False, **common)
    sc1, sh1 = _bn_scale_shift(st1, params["g1"], params["beta1"],
                               count=count, W=W, C=Cout, eps=eps)

    # Block 2: BN1 + ReLU fused into conv2's load path; raw conv2 + stats.
    c2, st2 = _conv3x3_rowslab(
        c1, _banded_conv_weights(w2, W), _lane_row(sc1, W), _lane_row(sh1, W),
        Ci=Cout, Co=Cout, apply_affine=True, apply_relu=True, **common)
    sc2, sh2 = _bn_scale_shift(st2, params["g2"], params["beta2"],
                               count=count, W=W, C=Cout, eps=eps)

    # Final BN2 + ReLU (lane-dense elementwise kernel).
    y = _bn_relu_rowslab(c2, _lane_row(sc2, W), _lane_row(sh2, W),
                         row_tile=row_tile)
    return jnp.transpose(y.reshape(N, H, W, Cout), (0, 3, 1, 2))


# ---------------- pure-JAX reference (for correctness check) ----------------
def _ref_block(x_nchw, w_oihw, b, gamma, beta, eps=1e-5):
    y = jax.lax.conv_general_dilated(
        x_nchw, w_oihw, window_strides=(1, 1), padding=((1, 1), (1, 1)),
        dimension_numbers=("NCHW", "OIHW", "NCHW"))
    y = y + b[None, :, None, None]
    mean = jnp.mean(y, axis=(0, 2, 3), keepdims=True)
    var = jnp.mean((y - mean) ** 2, axis=(0, 2, 3), keepdims=True)
    y = (y - mean) * jax.lax.rsqrt(var + eps)
    y = y * gamma[None, :, None, None] + beta[None, :, None, None]
    return jnp.maximum(y, 0.0)


def double_conv_reference(x_nchw, w1_oihw, b1, g1, be1, w2_oihw, b2, g2, be2):
    y = _ref_block(x_nchw, w1_oihw, b1, g1, be1)
    y = _ref_block(y, w2_oihw, b2, g2, be2)
    return y


if __name__ == "__main__":
    key = jax.random.PRNGKey(0)
    N, in_ch, out_ch, H, W = 2, 4, 8, 16, 16

    k = jax.random.split(key, 5)
    x = jax.random.normal(k[0], (N, in_ch, H, W), jnp.float32)

    # Deterministic parameter init (shapes per nn.Conv2d / nn.BatchNorm2d).
    w1_oihw = jax.random.normal(k[1], (out_ch, in_ch, 3, 3), jnp.float32) * 0.1
    b1 = jax.random.normal(k[2], (out_ch,), jnp.float32) * 0.1
    w2_oihw = jax.random.normal(k[3], (out_ch, out_ch, 3, 3), jnp.float32) * 0.1
    b2 = jax.random.normal(k[4], (out_ch,), jnp.float32) * 0.1
    g1 = jnp.ones((out_ch,), jnp.float32)
    beta1 = jnp.zeros((out_ch,), jnp.float32)
    g2 = jnp.ones((out_ch,), jnp.float32)
    beta2 = jnp.zeros((out_ch,), jnp.float32)

    params = {
        "w1": jnp.transpose(w1_oihw, (2, 3, 1, 0)),  # OIHW -> HWIO
        "b1": b1, "g1": g1, "beta1": beta1,          # conv bias kept in params
        "w2": jnp.transpose(w2_oihw, (2, 3, 1, 0)),  # (cancelled by BN; unused)
        "b2": b2, "g2": g2, "beta2": beta2,
    }

    # row_tile=8 -> grid (N, 2) per conv block, exercising both the real-halo
    # and the zeroed-boundary paths.
    fwd = jax.jit(functools.partial(double_conv_forward, row_tile=8))
    out = jax.block_until_ready(fwd(x, params))
    assert out.shape == (N, out_ch, H, W), out.shape

    ref = jax.block_until_ready(
        double_conv_reference(x, w1_oihw, b1, g1, beta1,
                              w2_oihw, b2, g2, beta2))
    assert jnp.allclose(out, ref, rtol=1e-4, atol=1e-4), (
        float(jnp.max(jnp.abs(out - ref))))

    print("KERNEL_OK")
</pallas_src>

<mosaic_0001>
module attributes {stable_mosaic.version = 11 : i64} {
  func.func @_conv_block_kernel(%arg0: i32, %arg1: i32, %arg2: memref<8x64xf32, #tpu.memory_space<vmem>>, %arg3: memref<8x64xf32, #tpu.memory_space<vmem>>, %arg4: memref<8x64xf32, #tpu.memory_space<vmem>>, %arg5: memref<3x64x128xf32, #tpu.memory_space<vmem>>, %arg6: memref<1x64xf32, #tpu.memory_space<vmem>>, %arg7: memref<1x64xf32, #tpu.memory_space<vmem>>, %arg8: memref<8x128xf32, #tpu.memory_space<vmem>>, %arg9: memref<1x2x128xf32, #tpu.memory_space<vmem>>) attributes {dimension_semantics = [#tpu.dimension_semantics<parallel>, #tpu.dimension_semantics<parallel>], iteration_bounds = array<i64: 2, 2>, scalar_prefetch = 0 : i64, scratch_operands = 0 : i64, tpu.core_type = #tpu.core_type<tc>, window_params = [{transform_indices = @transform_0, window_bounds = array<i64: 8, 64>}, {transform_indices = @transform_1, window_bounds = array<i64: 8, 64>}, {transform_indices = @transform_2, window_bounds = array<i64: 8, 64>}, {pipeline_mode = #tpu.pipeline_mode<synchronous>, transform_indices = @transform_3, window_bounds = array<i64: 3, 64, 128>}, {pipeline_mode = #tpu.pipeline_mode<synchronous>, transform_indices = @transform_4, window_bounds = array<i64: 1, 64>}, {pipeline_mode = #tpu.pipeline_mode<synchronous>, transform_indices = @transform_5, window_bounds = array<i64: 1, 64>}, {transform_indices = @transform_6, window_bounds = array<i64: 8, 128>}, {transform_indices = @transform_7, window_bounds = array<i64: 1, 2, 128>}]} {
    %c0_i32 = arith.constant 0 : i32
    %0 = arith.cmpi eq, %arg1, %c0_i32 : i32
    %c7 = arith.constant 7 : index
    %c0 = arith.constant 0 : index
    %1 = vector.load %arg2[%c7, %c0] : memref<8x64xf32, #tpu.memory_space<vmem>>, vector<1x64xf32>
    %cst = arith.constant 0.000000e+00 : f32
    %2 = vector.broadcast %cst : f32 to vector<1x64xf32>
    %3 = arith.select %0, %2, %1 : vector<1x64xf32>
    %c1_i32 = arith.constant 1 : i32
    %4 = arith.cmpi eq, %arg1, %c1_i32 : i32
    %c0_0 = arith.constant 0 : index
    %c0_1 = arith.constant 0 : index
    %5 = vector.load %arg4[%c0_0, %c0_1] : memref<8x64xf32, #tpu.memory_space<vmem>>, vector<1x64xf32>
    %cst_2 = arith.constant 0.000000e+00 : f32
    %6 = vector.broadcast %cst_2 : f32 to vector<1x64xf32>
    %7 = arith.select %4, %6, %5 : vector<1x64xf32>
    %c0_3 = arith.constant 0 : index
    %c0_4 = arith.constant 0 : index
    %8 = vector.load %arg3[%c0_3, %c0_4] : memref<8x64xf32, #tpu.memory_space<vmem>>, vector<8x64xf32>
    %9 = tpu.concatenate %3, %8, %7 in 0 : vector<1x64xf32>, vector<8x64xf32>, vector<1x64xf32> -> vector<10x64xf32>
    %10 = vector.extract_strided_slice %9 {offsets = [0, 0], sizes = [8, 64], strides = [1, 1]} : vector<10x64xf32> to vector<8x64xf32>
    %c0_5 = arith.constant 0 : index
    %c0_6 = arith.constant 0 : index
    %c0_7 = arith.constant 0 : index
    %11 = vector.load %arg5[%c0_5, %c0_6, %c0_7] : memref<3x64x128xf32, #tpu.memory_space<vmem>>, vector<1x64x128xf32>
    %12 = vector.shape_cast %11 : vector<1x64x128xf32> to vector<64x128xf32>
    %cst_8 = arith.constant dense<0.000000e+00> : vector<8x128xf32>
    %13 = tpu.matmul %10, %12, %cst_8 {dimension_numbers = #tpu.dot_dimension_numbers<[1], [0], [0], [1], [0, 0, 1, 1], [], []>} : vector<8x64xf32>, vector<64x128xf32>, vector<8x128xf32> -> vector<8x128xf32>
    %14 = vector.extract_strided_slice %9 {offsets = [1, 0], sizes = [8, 64], strides = [1, 1]} : vector<10x64xf32> to vector<8x64xf32>
    %c1 = arith.constant 1 : index
    %c0_9 = arith.constant 0 : index
    %c0_10 = arith.constant 0 : index
    %15 = vector.load %arg5[%c1, %c0_9, %c0_10] : memref<3x64x128xf32, #tpu.memory_space<vmem>>, vector<1x64x128xf32>
    %16 = vector.shape_cast %15 : vector<1x64x128xf32> to vector<64x128xf32>
    %cst_11 = arith.constant dense<0.000000e+00> : vector<8x128xf32>
    %17 = tpu.matmul %14, %16, %cst_11 {dimension_numbers = #tpu.dot_dimension_numbers<[1], [0], [0], [1], [0, 0, 1, 1], [], []>} : vector<8x64xf32>, vector<64x128xf32>, vector<8x128xf32> -> vector<8x128xf32>
    %18 = arith.addf %13, %17 : vector<8x128xf32>
    %19 = vector.extract_strided_slice %9 {offsets = [2, 0], sizes = [8, 64], strides = [1, 1]} : vector<10x64xf32> to vector<8x64xf32>
    %c2 = arith.constant 2 : index
    %c0_12 = arith.constant 0 : index
    %c0_13 = arith.constant 0 : index
    %20 = vector.load %arg5[%c2, %c0_12, %c0_13] : memref<3x64x128xf32, #tpu.memory_space<vmem>>, vector<1x64x128xf32>
    %21 = vector.shape_cast %20 : vector<1x64x128xf32> to vector<64x128xf32>
    %cst_14 = arith.constant dense<0.000000e+00> : vector<8x128xf32>
    %22 = tpu.matmul %19, %21, %cst_14 {dimension_numbers = #tpu.dot_dimension_numbers<[1], [0], [0], [1], [0, 0, 1, 1], [], []>} : vector<8x64xf32>, vector<64x128xf32>, vector<8x128xf32> -> vector<8x128xf32>
    %23 = arith.addf %18, %22 : vector<8x128xf32>
    %c0_15 = arith.constant 0 : index
    %c0_16 = arith.constant 0 : index
    %24 = vector.load %arg8[%c0_15, %c0_16] : memref<8x128xf32, #tpu.memory_space<vmem>>, vector<8x128xf32>
    tpu.vector_store %arg8[%c0_15, %c0_16], %23 {strides = array<i32>} : memref<8x128xf32, #tpu.memory_space<vmem>>, vector<8x128xf32>,
    %cst_17 = arith.constant dense<0.000000e+00> : vector<128xf32>
    %25 = vector.multi_reduction <add>, %23, %cst_17 [0] : vector<8x128xf32> to vector<128xf32>
    %26 = vector.shape_cast %25 : vector<128xf32> to vector<1x128xf32>
    %27 = arith.mulf %23, %23 : vector<8x128xf32>
    %cst_18 = arith.constant dense<0.000000e+00> : vector<128xf32>
    %28 = vector.multi_reduction <add>, %27, %cst_18 [0] : vector<8x128xf32> to vector<128xf32>
    %29 = vector.shape_cast %28 : vector<128xf32> to vector<1x128xf32>
    %30 = tpu.concatenate %26, %29 in 0 : vector<1x128xf32>, vector<1x128xf32> -> vector<2x128xf32>
    %31 = vector.shape_cast %30 : vector<2x128xf32> to vector<1x2x128xf32>
    %c0_19 = arith.constant 0 : index
    %c0_20 = arith.constant 0 : index
    %c0_21 = arith.constant 0 : index
    %32 = vector.load %arg9[%c0_19, %c0_20, %c0_21] : memref<1x2x128xf32, #tpu.memory_space<vmem>>, vector<1x2x128xf32>
    tpu.vector_store %arg9[%c0_19, %c0_20, %c0_21], %31 {strides = array<i32>} : memref<1x2x128xf32, #tpu.memory_space<vmem>>, vector<1x2x128xf32>,
    return
  }
  func.func @transform_0(%arg0: i32, %arg1: i32) -> (i32, i32) {
    %c2_i32 = arith.constant 2 : i32
    %0 = arith.muli %arg0, %c2_i32 : i32
    %1 = arith.addi %0, %arg1 : i32
    %c1_i32 = arith.constant 1 : i32
    %2 = arith.muli %1, %c1_i32 : i32
    %c1_i32_0 = arith.constant 1 : i32
    %3 = arith.subi %2, %c1_i32_0 : i32
    %c0_i32 = arith.constant 0 : i32
    %4 = arith.maxsi %3, %c0_i32 : i32
    %c0_i32_1 = arith.constant 0 : i32
    %c0_i32_2 = arith.constant 0 : i32
    return %4, %c0_i32_1 : i32, i32
  }
  func.func @transform_1(%arg0: i32, %arg1: i32) -> (i32, i32) {
    %c2_i32 = arith.constant 2 : i32
    %0 = arith.muli %arg0, %c2_i32 : i32
    %1 = arith.addi %0, %arg1 : i32
    %c0_i32 = arith.constant 0 : i32
    %c0_i32_0 = arith.constant 0 : i32
    return %1, %c0_i32 : i32, i32
  }
  func.func @transform_2(%arg0: i32, %arg1: i32) -> (i32, i32) {
    %c2_i32 = arith.constant 2 : i32
    %0 = arith.muli %arg0, %c2_i32 : i32
    %1 = arith.addi %0, %arg1 : i32
    %c1_i32 = arith.constant 1 : i32
    %2 = arith.addi %1, %c1_i32 : i32
    %c1_i32_0 = arith.constant 1 : i32
    %3 = arith.muli %2, %c1_i32_0 : i32
    %c3_i32 = arith.constant 3 : i32
    %4 = arith.minsi %3, %c3_i32 : i32
    %c0_i32 = arith.constant 0 : i32
    %c0_i32_1 = arith.constant 0 : i32
    return %4, %c0_i32 : i32, i32
  }
  func.func @transform_3(%arg0: i32, %arg1: i32) -> (i32, i32, i32) {
    %c0_i32 = arith.constant 0 : i32
    %c0_i32_0 = arith.constant 0 : i32
    %c0_i32_1 = arith.constant 0 : i32
    %c0_i32_2 = arith.constant 0 : i32
    return %c0_i32, %c0_i32_0, %c0_i32_1 : i32, i32, i32
  }
  func.func @transform_4(%arg0: i32, %arg1: i32) -> (i32, i32) {
    %c0_i32 = arith.constant 0 : i32
    %c0_i32_0 = arith.constant 0 : i32
    %c0_i32_1 = arith.constant 0 : i32
    return %c0_i32, %c0_i32_0 : i32, i32
  }
  func.func @transform_5(%arg0: i32, %arg1: i32) -> (i32, i32) {
    %c0_i32 = arith.constant 0 : i32
    %c0_i32_0 = arith.constant 0 : i32
    %c0_i32_1 = arith.constant 0 : i32
    return %c0_i32, %c0_i32_0 : i32, i32
  }
  func.func @transform_6(%arg0: i32, %arg1: i32) -> (i32, i32) {
    %c2_i32 = arith.constant 2 : i32
    %0 = arith.muli %arg0, %c2_i32 : i32
    %1 = arith.addi %0, %arg1 : i32
    %c0_i32 = arith.constant 0 : i32
    %c0_i32_0 = arith.constant 0 : i32
    return %1, %c0_i32 : i32, i32
  }
  func.func @transform_7(%arg0: i32, %arg1: i32) -> (i32, i32, i32) {
    %c2_i32 = arith.constant 2 : i32
    %0 = arith.muli %arg0, %c2_i32 : i32
    %1 = arith.addi %0, %arg1 : i32
    %c0_i32 = arith.constant 0 : i32
    %c0_i32_0 = arith.constant 0 : i32
    %c0_i32_1 = arith.constant 0 : i32
    return %1, %c0_i32, %c0_i32_0 : i32, i32, i32
  }
}

module attributes {stable_mosaic.version = 11 : i64} {
  func.func @_conv_block_kernel(%arg0: i32, %arg1: i32, %arg2: memref<8x128xf32, #tpu.memory_space<vmem>>, %arg3: memref<8x128xf32, #tpu.memory_space<vmem>>, %arg4: memref<8x128xf32, #tpu.memory_space<vmem>>, %arg5: memref<3x128x128xf32, #tpu.memory_space<vmem>>, %arg6: memref<1x128xf32, #tpu.memory_space<vmem>>, %arg7: memref<1x128xf32, #tpu.memory_space<vmem>>, %arg8: memref<8x128xf32, #tpu.memory_space<vmem>>, %arg9: memref<1x2x128xf32, #tpu.memory_space<vmem>>) attributes {dimension_semantics = [#tpu.dimension_semantics<parallel>, #tpu.dimension_semantics<parallel>], iteration_bounds = array<i64: 2, 2>, scalar_prefetch = 0 : i64, scratch_operands = 0 : i64, tpu.core_type = #tpu.core_type<tc>, window_params = [{transform_indices = @transform_0, window_bounds = array<i64: 8, 128>}, {transform_indices = @transform_1, window_bounds = array<i64: 8, 128>}, {transform_indices = @transform_2, window_bounds = array<i64: 8, 128>}, {pipeline_mode = #tpu.pipeline_mode<synchronous>, transform_indices = @transform_3, window_bounds = array<i64: 3, 128, 128>}, {pipeline_mode = #tpu.pipeline_mode<synchronous>, transform_indices = @transform_4, window_bounds = array<i64: 1, 128>}, {pipeline_mode = #tpu.pipeline_mode<synchronous>, transform_indices = @transform_5, window_bounds = array<i64: 1, 128>}, {transform_indices = @transform_6, window_bounds = array<i64: 8, 128>}, {transform_indices = @transform_7, window_bounds = array<i64: 1, 2, 128>}]} {
    %c0_i32 = arith.constant 0 : i32
    %0 = arith.cmpi eq, %arg1, %c0_i32 : i32
    %c7 = arith.constant 7 : index
    %c0 = arith.constant 0 : index
    %1 = vector.load %arg2[%c7, %c0] : memref<8x128xf32, #tpu.memory_space<vmem>>, vector<1x128xf32>
    %c0_0 = arith.constant 0 : index
    %c0_1 = arith.constant 0 : index
    %2 = vector.load %arg6[%c0_0, %c0_1] : memref<1x128xf32, #tpu.memory_space<vmem>>, vector<1x128xf32>
    %3 = arith.mulf %1, %2 : vector<1x128xf32>
    %c0_2 = arith.constant 0 : index
    %c0_3 = arith.constant 0 : index
    %4 = vector.load %arg7[%c0_2, %c0_3] : memref<1x128xf32, #tpu.memory_space<vmem>>, vector<1x128xf32>
    %5 = arith.addf %3, %4 : vector<1x128xf32>
    %cst = arith.constant 0.000000e+00 : f32
    %6 = vector.broadcast %cst : f32 to vector<1x128xf32>
    %7 = arith.maximumf %5, %6 : vector<1x128xf32>
    %cst_4 = arith.constant 0.000000e+00 : f32
    %8 = vector.broadcast %cst_4 : f32 to vector<1x128xf32>
    %9 = arith.select %0, %8, %7 : vector<1x128xf32>
    %c1_i32 = arith.constant 1 : i32
    %10 = arith.cmpi eq, %arg1, %c1_i32 : i32
    %c0_5 = arith.constant 0 : index
    %c0_6 = arith.constant 0 : index
    %11 = vector.load %arg4[%c0_5, %c0_6] : memref<8x128xf32, #tpu.memory_space<vmem>>, vector<1x128xf32>
    %c0_7 = arith.constant 0 : index
    %c0_8 = arith.constant 0 : index
    %12 = vector.load %arg6[%c0_7, %c0_8] : memref<1x128xf32, #tpu.memory_space<vmem>>, vector<1x128xf32>
    %13 = arith.mulf %11, %12 : vector<1x128xf32>
    %c0_9 = arith.constant 0 : index
    %c0_10 = arith.constant 0 : index
    %14 = vector.load %arg7[%c0_9, %c0_10] : memref<1x128xf32, #tpu.memory_space<vmem>>, vector<1x128xf32>
    %15 = arith.addf %13, %14 : vector<1x128xf32>
    %cst_11 = arith.constant 0.000000e+00 : f32
    %16 = vector.broadcast %cst_11 : f32 to vector<1x128xf32>
    %17 = arith.maximumf %15, %16 : vector<1x128xf32>
    %cst_12 = arith.constant 0.000000e+00 : f32
    %18 = vector.broadcast %cst_12 : f32 to vector<1x128xf32>
    %19 = arith.select %10, %18, %17 : vector<1x128xf32>
    %c0_13 = arith.constant 0 : index
    %c0_14 = arith.constant 0 : index
    %20 = vector.load %arg3[%c0_13, %c0_14] : memref<8x128xf32, #tpu.memory_space<vmem>>, vector<8x128xf32>
    %c0_15 = arith.constant 0 : index
    %c0_16 = arith.constant 0 : index
    %21 = vector.load %arg6[%c0_15, %c0_16] : memref<1x128xf32, #tpu.memory_space<vmem>>, vector<1x128xf32>
    %22 = vector.broadcast %21 : vector<1x128xf32> to vector<8x128xf32>
    %23 = arith.mulf %20, %22 : vector<8x128xf32>
    %c0_17 = arith.constant 0 : index
    %c0_18 = arith.constant 0 : index
    %24 = vector.load %arg7[%c0_17, %c0_18] : memref<1x128xf32, #tpu.memory_space<vmem>>, vector<1x128xf32>
    %25 = vector.broadcast %24 : vector<1x128xf32> to vector<8x128xf32>
    %26 = arith.addf %23, %25 : vector<8x128xf32>
    %cst_19 = arith.constant 0.000000e+00 : f32
    %27 = vector.broadcast %cst_19 : f32 to vector<8x128xf32>
    %28 = arith.maximumf %26, %27 : vector<8x128xf32>
    %29 = tpu.concatenate %9, %28, %19 in 0 : vector<1x128xf32>, vector<8x128xf32>, vector<1x128xf32> -> vector<10x128xf32>
    %30 = vector.extract_strided_slice %29 {offsets = [0, 0], sizes = [8, 128], strides = [1, 1]} : vector<10x128xf32> to vector<8x128xf32>
    %c0_20 = arith.constant 0 : index
    %c0_21 = arith.constant 0 : index
    %c0_22 = arith.constant 0 : index
    %31 = vector.load %arg5[%c0_20, %c0_21, %c0_22] : memref<3x128x128xf32, #tpu.memory_space<vmem>>, vector<1x128x128xf32>
    %32 = vector.shape_cast %31 : vector<1x128x128xf32> to vector<128x128xf32>
    %cst_23 = arith.constant dense<0.000000e+00> : vector<8x128xf32>
    %33 = tpu.matmul %30, %32, %cst_23 {dimension_numbers = #tpu.dot_dimension_numbers<[1], [0], [0], [1], [0, 0, 1, 1], [], []>} : vector<8x128xf32>, vector<128x128xf32>, vector<8x128xf32> -> vector<8x128xf32>
    %34 = vector.extract_strided_slice %29 {offsets = [1, 0], sizes = [8, 128], strides = [1, 1]} : vector<10x128xf32> to vector<8x128xf32>
    %c1 = arith.constant 1 : index
    %c0_24 = arith.constant 0 : index
    %c0_25 = arith.constant 0 : index
    %35 = vector.load %arg5[%c1, %c0_24, %c0_25] : memref<3x128x128xf32, #tpu.memory_space<vmem>>, vector<1x128x128xf32>
    %36 = vector.shape_cast %35 : vector<1x128x128xf32> to vector<128x128xf32>
    %cst_26 = arith.constant dense<0.000000e+00> : vector<8x128xf32>
    %37 = tpu.matmul %34, %36, %cst_26 {dimension_numbers = #tpu.dot_dimension_numbers<[1], [0], [0], [1], [0, 0, 1, 1], [], []>} : vector<8x128xf32>, vector<128x128xf32>, vector<8x128xf32> -> vector<8x128xf32>
    %38 = arith.addf %33, %37 : vector<8x128xf32>
    %39 = vector.extract_strided_slice %29 {offsets = [2, 0], sizes = [8, 128], strides = [1, 1]} : vector<10x128xf32> to vector<8x128xf32>
    %c2 = arith.constant 2 : index
    %c0_27 = arith.constant 0 : index
    %c0_28 = arith.constant 0 : index
    %40 = vector.load %arg5[%c2, %c0_27, %c0_28] : memref<3x128x128xf32, #tpu.memory_space<vmem>>, vector<1x128x128xf32>
    %41 = vector.shape_cast %40 : vector<1x128x128xf32> to vector<128x128xf32>
    %cst_29 = arith.constant dense<0.000000e+00> : vector<8x128xf32>
    %42 = tpu.matmul %39, %41, %cst_29 {dimension_numbers = #tpu.dot_dimension_numbers<[1], [0], [0], [1], [0, 0, 1, 1], [], []>} : vector<8x128xf32>, vector<128x128xf32>, vector<8x128xf32> -> vector<8x128xf32>
    %43 = arith.addf %38, %42 : vector<8x128xf32>
    %c0_30 = arith.constant 0 : index
    %c0_31 = arith.constant 0 : index
    %44 = vector.load %arg8[%c0_30, %c0_31] : memref<8x128xf32, #tpu.memory_space<vmem>>, vector<8x128xf32>
    tpu.vector_store %arg8[%c0_30, %c0_31], %43 {strides = array<i32>} : memref<8x128xf32, #tpu.memory_space<vmem>>, vector<8x128xf32>,
    %cst_32 = arith.constant dense<0.000000e+00> : vector<128xf32>
    %45 = vector.multi_reduction <add>, %43, %cst_32 [0] : vector<8x128xf32> to vector<128xf32>
    %46 = vector.shape_cast %45 : vector<128xf32> to vector<1x128xf32>
    %47 = arith.mulf %43, %43 : vector<8x128xf32>
    %cst_33 = arith.constant dense<0.000000e+00> : vector<128xf32>
    %48 = vector.multi_reduction <add>, %47, %cst_33 [0] : vector<8x128xf32> to vector<128xf32>
    %49 = vector.shape_cast %48 : vector<128xf32> to vector<1x128xf32>
    %50 = tpu.concatenate %46, %49 in 0 : vector<1x128xf32>, vector<1x128xf32> -> vector<2x128xf32>
    %51 = vector.shape_cast %50 : vector<2x128xf32> to vector<1x2x128xf32>
    %c0_34 = arith.constant 0 : index
    %c0_35 = arith.constant 0 : index
    %c0_36 = arith.constant 0 : index
    %52 = vector.load %arg9[%c0_34, %c0_35, %c0_36] : memref<1x2x128xf32, #tpu.memory_space<vmem>>, vector<1x2x128xf32>
    tpu.vector_store %arg9[%c0_34, %c0_35, %c0_36], %51 {strides = array<i32>} : memref<1x2x128xf32, #tpu.memory_space<vmem>>, vector<1x2x128xf32>,
    return
  }
  func.func @transform_0(%arg0: i32, %arg1: i32) -> (i32, i32) {
    %c2_i32 = arith.constant 2 : i32
    %0 = arith.muli %arg0, %c2_i32 : i32
    %1 = arith.addi %0, %arg1 : i32
    %c1_i32 = arith.constant 1 : i32
    %2 = arith.muli %1, %c1_i32 : i32
    %c1_i32_0 = arith.constant 1 : i32
    %3 = arith.subi %2, %c1_i32_0 : i32
    %c0_i32 = arith.constant 0 : i32
    %4 = arith.maxsi %3, %c0_i32 : i32
    %c0_i32_1 = arith.constant 0 : i32
    %c0_i32_2 = arith.constant 0 : i32
    return %4, %c0_i32_1 : i32, i32
  }
  func.func @transform_1(%arg0: i32, %arg1: i32) -> (i32, i32) {
    %c2_i32 = arith.constant 2 : i32
    %0 = arith.muli %arg0, %c2_i32 : i32
    %1 = arith.addi %0, %arg1 : i32
    %c0_i32 = arith.constant 0 : i32
    %c0_i32_0 = arith.constant 0 : i32
    return %1, %c0_i32 : i32, i32
  }
  func.func @transform_2(%arg0: i32, %arg1: i32) -> (i32, i32) {
    %c2_i32 = arith.constant 2 : i32
    %0 = arith.muli %arg0, %c2_i32 : i32
    %1 = arith.addi %0, %arg1 : i32
    %c1_i32 = arith.constant 1 : i32
    %2 = arith.addi %1, %c1_i32 : i32
    %c1_i32_0 = arith.constant 1 : i32
    %3 = arith.muli %2, %c1_i32_0 : i32
    %c3_i32 = arith.constant 3 : i32
    %4 = arith.minsi %3, %c3_i32 : i32
    %c0_i32 = arith.constant 0 : i32
    %c0_i32_1 = arith.constant 0 : i32
    return %4, %c0_i32 : i32, i32
  }
  func.func @transform_3(%arg0: i32, %arg1: i32) -> (i32, i32, i32) {
    %c0_i32 = arith.constant 0 : i32
    %c0_i32_0 = arith.constant 0 : i32
    %c0_i32_1 = arith.constant 0 : i32
    %c0_i32_2 = arith.constant 0 : i32
    return %c0_i32, %c0_i32_0, %c0_i32_1 : i32, i32, i32
  }
  func.func @transform_4(%arg0: i32, %arg1: i32) -> (i32, i32) {
    %c0_i32 = arith.constant 0 : i32
    %c0_i32_0 = arith.constant 0 : i32
    %c0_i32_1 = arith.constant 0 : i32
    return %c0_i32, %c0_i32_0 : i32, i32
  }
  func.func @transform_5(%arg0: i32, %arg1: i32) -> (i32, i32) {
    %c0_i32 = arith.constant 0 : i32
    %c0_i32_0 = arith.constant 0 : i32
    %c0_i32_1 = arith.constant 0 : i32
    return %c0_i32, %c0_i32_0 : i32, i32
  }
  func.func @transform_6(%arg0: i32, %arg1: i32) -> (i32, i32) {
    %c2_i32 = arith.constant 2 : i32
    %0 = arith.muli %arg0, %c2_i32 : i32
    %1 = arith.addi %0, %arg1 : i32
    %c0_i32 = arith.constant 0 : i32
    %c0_i32_0 = arith.constant 0 : i32
    return %1, %c0_i32 : i32, i32
  }
  func.func @transform_7(%arg0: i32, %arg1: i32) -> (i32, i32, i32) {
    %c2_i32 = arith.constant 2 : i32
    %0 = arith.muli %arg0, %c2_i32 : i32
    %1 = arith.addi %0, %arg1 : i32
    %c0_i32 = arith.constant 0 : i32
    %c0_i32_0 = arith.constant 0 : i32
    %c0_i32_1 = arith.constant 0 : i32
    return %1, %c0_i32, %c0_i32_0 : i32, i32, i32
  }
}

module attributes {stable_mosaic.version = 11 : i64} {
  func.func @_bn_relu_kernel(%arg0: i32, %arg1: memref<8x128xf32, #tpu.memory_space<vmem>>, %arg2: memref<1x128xf32, #tpu.memory_space<vmem>>, %arg3: memref<1x128xf32, #tpu.memory_space<vmem>>, %arg4: memref<8x128xf32, #tpu.memory_space<vmem>>) attributes {dimension_semantics = [#tpu.dimension_semantics<parallel>], iteration_bounds = array<i64: 4>, scalar_prefetch = 0 : i64, scratch_operands = 0 : i64, tpu.core_type = #tpu.core_type<tc>, window_params = [{transform_indices = @transform_0, window_bounds = array<i64: 8, 128>}, {pipeline_mode = #tpu.pipeline_mode<synchronous>, transform_indices = @transform_1, window_bounds = array<i64: 1, 128>}, {pipeline_mode = #tpu.pipeline_mode<synchronous>, transform_indices = @transform_2, window_bounds = array<i64: 1, 128>}, {transform_indices = @transform_3, window_bounds = array<i64: 8, 128>}]} {
    %c0 = arith.constant 0 : index
    %c0_0 = arith.constant 0 : index
    %0 = vector.load %arg1[%c0, %c0_0] : memref<8x128xf32, #tpu.memory_space<vmem>>, vector<8x128xf32>
    %c0_1 = arith.constant 0 : index
    %c0_2 = arith.constant 0 : index
    %1 = vector.load %arg2[%c0_1, %c0_2] : memref<1x128xf32, #tpu.memory_space<vmem>>, vector<1x128xf32>
    %2 = vector.broadcast %1 : vector<1x128xf32> to vector<8x128xf32>
    %3 = arith.mulf %0, %2 : vector<8x128xf32>
    %c0_3 = arith.constant 0 : index
    %c0_4 = arith.constant 0 : index
    %4 = vector.load %arg3[%c0_3, %c0_4] : memref<1x128xf32, #tpu.memory_space<vmem>>, vector<1x128xf32>
    %5 = vector.broadcast %4 : vector<1x128xf32> to vector<8x128xf32>
    %6 = arith.addf %3, %5 : vector<8x128xf32>
    %cst = arith.constant 0.000000e+00 : f32
    %7 = vector.broadcast %cst : f32 to vector<8x128xf32>
    %8 = arith.maximumf %6, %7 : vector<8x128xf32>
    %c0_5 = arith.constant 0 : index
    %c0_6 = arith.constant 0 : index
    %9 = vector.load %arg4[%c0_5, %c0_6] : memref<8x128xf32, #tpu.memory_space<vmem>>, vector<8x128xf32>
    tpu.vector_store %arg4[%c0_5, %c0_6], %8 {strides = array<i32>} : memref<8x128xf32, #tpu.memory_space<vmem>>, vector<8x128xf32>,
    return
  }
  func.func @transform_0(%arg0: i32) -> (i32, i32) {
    %c0_i32 = arith.constant 0 : i32
    %c0_i32_0 = arith.constant 0 : i32
    return %arg0, %c0_i32 : i32, i32
  }
  func.func @transform_1(%arg0: i32) -> (i32, i32) {
    %c0_i32 = arith.constant 0 : i32
    %c0_i32_0 = arith.constant 0 : i32
    %c0_i32_1 = arith.constant 0 : i32
    return %c0_i32, %c0_i32_0 : i32, i32
  }
  func.func @transform_2(%arg0: i32) -> (i32, i32) {
    %c0_i32 = arith.constant 0 : i32
    %c0_i32_0 = arith.constant 0 : i32
    %c0_i32_1 = arith.constant 0 : i32
    return %c0_i32, %c0_i32_0 : i32, i32
  }
  func.func @transform_3(%arg0: i32) -> (i32, i32) {
    %c0_i32 = arith.constant 0 : i32
    %c0_i32_0 = arith.constant 0 : i32
    return %arg0, %c0_i32 : i32, i32
  }
}

</mosaic_0001>

<llo_original>
// kernel: tile.28
$region0: #{tile.28}
  #allocation0 [shape = 's32[1]{0}', space=sflag, size = 0x4, scoped, tag = 'scoped memory for tile.28']
  %s0 = inlined_call_operand.vmem [shape: f32[8], index: 0, kind: input, shape index: {}]
  %s1 = inlined_call_operand.vmem [shape: f32[16,8], index: 1, kind: output, shape index: {}]
  // Predicated region
  $region2: #{tile.28} parent=0 // pred_check
    _
  $region3: #{tile.28} parent=0 // pred_check_branch
    %3 = sbr.rel (0) target = $region5
  $region4: #{tile.28} parent=0 // pred_region
    _
  $region5: #{tile.28} parent=0 // pred_fallthru
    _
  %v4 = vld [vmem:[%s0] ss:$0 sm:$0xff]
  %5 = vst [vmem:[%s1] sm:$0xff] %v4
  %s6 = scalar_lea.vmem %s1, 8
  %7 = vst [vmem:[%s6] sm:$0xff] %v4

// kernel: tile.29
$region0: #{tile.29}
  %s0 = inlined_call_operand.vmem [shape: f32[16,8], index: 0, kind: input, shape index: {}]
  %s1 = inlined_call_operand.vmem [shape: f32[1,128], index: 1, kind: output, shape index: {}]
  $region1: #{tile.29} parent=0
    #allocation0 [shape = 'u8[4096]{0}', space=vmem, size = 0x1000, scoped, tag = 'scoped mem for output reshape']
    %v2 = vld [vmem:[%s0] sm:$0x1]
    %vm3 = vcmask 64512
    %4 = vst.msk [vmem:[#allocation0] sm:$0x1] %vm3, %v2
    %s5 = scalar_lea.vmem %s0, 15
    %v6 = vld [vmem:[%s5] sm:$0x1]
    %7 = vrot.lane.b32.xlu0 %v6, 120
    %v8 = vpop.permute.xlu0 %7
    %vm9 = vcmask 1048512
    %10 = vst.msk [vmem:[#allocation0] sm:$0x1] %vm9, %v8
    %s11 = scalar_lea.vmem %s0, 14
    %v12 = vld [vmem:[%s11] sm:$0x1]
    %13 = vrot.lane.b32.xlu0 %v12, 112
    %v14 = vpop.permute.xlu0 %13
    %vm15 = vcmask 982912
    %16 = vst.msk [vmem:[#allocation0] sm:$0x1] %vm15, %v14
    %s17 = scalar_lea.vmem %s0, 13
    %v18 = vld [vmem:[%s17] sm:$0x1]
    %19 = vrot.lane.b32.xlu0 %v18, 104
    %v20 = vpop.permute.xlu0 %19
    %vm21 = vcmask 917312
    %22 = vst.msk [vmem:[#allocation0] sm:$0x1] %vm21, %v20
    %s23 = scalar_lea.vmem %s0, 12
    %v24 = vld [vmem:[%s23] sm:$0x1]
    %25 = vrot.lane.b32.xlu0 %v24, 96
    %v26 = vpop.permute.xlu0 %25
    %vm27 = vcmask 851712
    %28 = vst.msk [vmem:[#allocation0] sm:$0x1] %vm27, %v26
    %s29 = scalar_lea.vmem %s0, 11
    %v30 = vld [vmem:[%s29] sm:$0x1]
    %31 = vrot.lane.b32.xlu0 %v30, 88
    %v32 = vpop.permute.xlu0 %31
    %vm33 = vcmask 786112
    %34 = vst.msk [vmem:[#allocation0] sm:$0x1] %vm33, %v32
    %s35 = scalar_lea.vmem %s0, 10
    %v36 = vld [vmem:[%s35] sm:$0x1]
    %37 = vrot.lane.b32.xlu0 %v36, 80
    %v38 = vpop.permute.xlu0 %37
    %vm39 = vcmask 720512
    %40 = vst.msk [vmem:[#allocation0] sm:$0x1] %vm39, %v38
    %s41 = scalar_lea.vmem %s0, 9
    %v42 = vld [vmem:[%s41] sm:$0x1]
    %43 = vrot.lane.b32.xlu0 %v42, 72
    %v44 = vpop.permute.xlu0 %43
    %vm45 = vcmask 654912
    %46 = vst.msk [vmem:[#allocation0] sm:$0x1] %vm45, %v44
    %s47 = scalar_lea.vmem %s0, 8
    %v48 = vld [vmem:[%s47] sm:$0x1]
    %49 = vrot.lane.b32.xlu0 %v48, 64
    %v50 = vpop.permute.xlu0 %49
    %vm51 = vcmask 589312
    %52 = vst.msk [vmem:[#allocation0] sm:$0x1] %vm51, %v50
    %s53 = scalar_lea.vmem %s0, 7
    %v54 = vld [vmem:[%s53] sm:$0x1]
    %55 = vrot.lane.b32.xlu0 %v54, 56
    %v56 = vpop.permute.xlu0 %55
    %vm57 = vcmask 523712
    %58 = vst.msk [vmem:[#allocation0] sm:$0x1] %vm57, %v56
    %s59 = scalar_lea.vmem %s0, 6
    %v60 = vld [vmem:[%s59] sm:$0x1]
    %61 = vrot.lane.b32.xlu0 %v60, 48
    %v62 = vpop.permute.xlu0 %61
    %vm63 = vcmask 458112
    %64 = vst.msk [vmem:[#allocation0] sm:$0x1] %vm63, %v62
    %s65 = scalar_lea.vmem %s0, 5
    %v66 = vld [vmem:[%s65] sm:$0x1]
    %67 = vrot.lane.b32.xlu0 %v66, 40
    %v68 = vpop.permute.xlu0 %67
    %vm69 = vcmask 392512
    %70 = vst.msk [vmem:[#allocation0] sm:$0x1] %vm69, %v68
    %s71 = scalar_lea.vmem %s0, 4
    %v72 = vld [vmem:[%s71] sm:$0x1]
    %73 = vrot.lane.b32.xlu0 %v72, 32
    %v74 = vpop.permute.xlu0 %73
    %vm75 = vcmask 326912
    %76 = vst.msk [vmem:[#allocation0] sm:$0x1] %vm75, %v74
    %s77 = scalar_lea.vmem %s0, 3
    %v78 = vld [vmem:[%s77] sm:$0x1]
    %79 = vrot.lane.b32.xlu0 %v78, 24
    %v80 = vpop.permute.xlu0 %79
    %vm81 = vcmask 261312
    %82 = vst.msk [vmem:[#allocation0] sm:$0x1] %vm81, %v80
    %s83 = scalar_lea.vmem %s0, 2
    %v84 = vld [vmem:[%s83] sm:$0x1]
    %85 = vrot.lane.b32.xlu0 %v84, 16
    %v86 = vpop.permute.xlu0 %85
    %vm87 = vcmask 195712
    %88 = vst.msk [vmem:[#allocation0] sm:$0x1] %vm87, %v86
    %s89 = scalar_lea.vmem %s0, 1
    %v90 = vld [vmem:[%s89] sm:$0x1]
    %91 = vrot.lane.b32.xlu0 %v90, 8
    %v92 = vpop.permute.xlu0 %91
    %vm93 = vcmask 130112
    %94 = vst.msk [vmem:[#allocation0] sm:$0x1] %vm93, %v92
    %s96 = sshll.u32 1, 1
    %s97 = ssub.s32 %s96, 1
    %v99 = vld [vmem:[#allocation0] sm:%s97]
    %s100 = sshll.u32 1, 1
    %s101 = ssub.s32 %s100, 1
    %102 = vst [vmem:[%s1] sm:%s101] %v99

// kernel: double_conv_forward.3
$region0: #{double_conv_forward.3}
  #allocation0 [shape = 'u32[]', space=smem, size = 0x4, offset = 0x4, fixed_abs, tag = 'smem constant byte address 0x4 - core index']
  #allocation1 [shape = 'u32[144,128]{1,0:T(1,128)}', space=vmem, size = 0x12000, scoped, tag = 'internal scratch']
  %s0 = inlined_call_operand.vmem [shape: f32[32,64], index: 0, kind: input, shape index: {}, may-alias: {0,1,2}]
  %s1 = inlined_call_operand.vmem [shape: f32[32,64], index: 1, kind: input, shape index: {}, may-alias: {0,1,2}]
  %s2 = inlined_call_operand.vmem [shape: f32[32,64], index: 2, kind: input, shape index: {}, may-alias: {0,1,2}]
  %s3 = inlined_call_operand.vmem [shape: f32[3,64,128], index: 3, kind: input, shape index: {}]
  %s4 = inlined_call_operand.vmem [shape: f32[1,64], index: 4, kind: input, shape index: {}]
  %s5 = inlined_call_operand.vmem [shape: f32[1,64], index: 5, kind: input, shape index: {}]
  %s6 = inlined_call_operand.vmem [shape: f32[32,128], index: 6, kind: output, shape index: {0}]
  %s7 = inlined_call_operand.vmem [shape: f32[4,2,128], index: 7, kind: output, shape index: {1}]
  %8 = xla_tuple %s6, %s7
  %s9 = sld [smem:[#allocation0]]
  $region65: #{double_conv_forward.3} parent=0
    _
  %s11 = ssub.s32 1, %s9
  %s12 = scalar_select 0, %s11, %s9
  loop: start=0, step=1, limit=6
  $region2: #{double_conv_forward.3} parent=0 // loop_pre_header
    _
  $region3: #{double_conv_forward.3} parent=0 // loop_header
    %s14 = sphi 0, %s18
    %p15 = scmp.ge.s32.totalorder %s14, 6
    %s21 = sphi 0, %s33
    %s22 = sphi 0, %s29
    %s23 = sphi 0, %s21
    %s24 = sphi 0, %s22
    %s25 = sphi 0, %s23
    %s26 = sphi 0, %s24
    %s46 = sphi 0, %s48
    %s49 = sphi 0, %s46
    %s50 = sphi 0, %s49
    %s66 = sphi 0, %s50
    %s76 = sphi 0, %s78
    %s79 = sphi 0, %s76
    %s80 = sphi 0, %s79
    %s96 = sphi 0, %s80
    %s112 = sphi 0, %s114
    %s115 = sphi 0, %s112
    %s116 = sphi 0, %s115
    %s132 = sphi 0, %s116
    %s136 = sphi 0, %s136
    %s138 = sphi 0, %s136
    %s139 = sphi 0, %s138
    %s153 = sphi 0, %s139
    %s157 = sphi 0, %s157
    %s159 = sphi 0, %s157
    %s160 = sphi 0, %s159
    %s174 = sphi 0, %s160
    %s178 = sphi 0, %s178
    %s180 = sphi 0, %s178
    %s181 = sphi 0, %s180
    %s195 = sphi 0, %s181
    %s205 = sphi 0, %s207
    %s208 = sphi 0, %s205
    %s209 = sphi 0, %s208
    %s225 = sphi 0, %s209
    %s235 = sphi 0, %s237
    %s238 = sphi 0, %s235
    %s239 = sphi 0, %s238
    %s255 = sphi 0, %s239
  $region4: #{double_conv_forward.3} parent=0 // loop_header_branch
    %17 = sbr.rel (%p15) target = $region8
  $region5: #{double_conv_forward.3} parent=0 // loop_body
    %s19 = ssub.s32 %s14, 1
    %s20 = ssub.s32 %s14, 2
    %s27 = sadd.s32 1, %s22
    %p28 = scmp.ge.s32.totalorder %s27, 2
    %s29 = scalar_select %p28, 0, %s27
    %s30 = sadd.s32 1, %s21
    %s31 = scalar_select %p28, %s30, %s21
    %p32 = scmp.ge.s32.totalorder %s31, 2
    %s33 = scalar_select %p32, 0, %s31
    %s34 = smul.u32 %s21, 2
    %s35 = sadd.s32 %s34, %s22
    %s36 = ssub.s32 %s35, 1
    %p37 = scmp.gt.s32.totalorder %s36, 0
    %s38 = scalar_select %p37, %s36, 0
    %s39 = smul.u32 %s33, 2
    %s40 = sadd.s32 %s39, %s29
    %s41 = ssub.s32 %s40, 1
    %p42 = scmp.gt.s32.totalorder %s41, 0
    %s43 = scalar_select %p42, %s41, 0
    %s44 = ssub.s32 %s38, %s43
    %p45 = scmp.eq.s32.totalorder %s44, 0
    %s47 = sadd.s32 %s46, 1
    %s48 = scalar_select %p45, %s46, %s47
    %p51 = pneg %p45
    %p52 = scmp.eq.s32.totalorder %s14, 3
    %p53 = por %p51, %p52
    %p54 = scmp.ne.s32.totalorder %s46, %s49
    %p55 = scmp.eq.s32.totalorder %s14, 0
    %p56 = por %p54, %p55
    %p57 = scmp.ne.s32.totalorder %s46, %s49
    %p58 = scmp.eq.s32.totalorder %s19, 3
    %p59 = por %p57, %p58
    %p60 = scmp.ne.s32.totalorder %s49, %s50
    %p61 = scmp.eq.s32.totalorder %s19, 0
    %p62 = por %p60, %p61
    %p63 = scmp.ne.s32.totalorder %s49, %s50
    %p64 = scmp.eq.s32.totalorder %s20, 3
    %p65 = por %p63, %p64
    %p67 = scmp.ne.s32.totalorder %s50, %s66
    %p68 = scmp.eq.s32.totalorder %s20, 0
    %p69 = por %p67, %p68
    %s70 = smul.u32 %s21, 2
    %s71 = sadd.s32 %s70, %s22
    %s72 = smul.u32 %s33, 2
    %s73 = sadd.s32 %s72, %s29
    %s74 = ssub.s32 %s71, %s73
    %p75 = scmp.eq.s32.totalorder %s74, 0
    %s77 = sadd.s32 %s76, 1
    %s78 = scalar_select %p75, %s76, %s77
    %p81 = pneg %p75
    %p82 = scmp.eq.s32.totalorder %s14, 3
    %p83 = por %p81, %p82
    %p84 = scmp.ne.s32.totalorder %s76, %s79
    %p85 = scmp.eq.s32.totalorder %s14, 0
    %p86 = por %p84, %p85
    %p87 = scmp.ne.s32.totalorder %s76, %s79
    %p88 = scmp.eq.s32.totalorder %s19, 3
    %p89 = por %p87, %p88
    %p90 = scmp.ne.s32.totalorder %s79, %s80
    %p91 = scmp.eq.s32.totalorder %s19, 0
    %p92 = por %p90, %p91
    %p93 = scmp.ne.s32.totalorder %s79, %s80
    %p94 = scmp.eq.s32.totalorder %s20, 3
    %p95 = por %p93, %p94
    %p97 = scmp.ne.s32.totalorder %s80, %s96
    %p98 = scmp.eq.s32.totalorder %s20, 0
    %p99 = por %p97, %p98
    %s100 = smul.u32 %s21, 2
    %s101 = sadd.s32 %s100, %s22
    %s102 = sadd.s32 %s101, 1
    %p103 = scmp.lt.s32.totalorder %s102, 3
    %s104 = scalar_select %p103, %s102, 3
    %s105 = smul.u32 %s33, 2
    %s106 = sadd.s32 %s105, %s29
    %s107 = sadd.s32 %s106, 1
    %p108 = scmp.lt.s32.totalorder %s107, 3
    %s109 = scalar_select %p108, %s107, 3
    %s110 = ssub.s32 %s104, %s109
    %p111 = scmp.eq.s32.totalorder %s110, 0
    %s113 = sadd.s32 %s112, 1
    %s114 = scalar_select %p111, %s112, %s113
    %p117 = pneg %p111
    %p118 = scmp.eq.s32.totalorder %s14, 3
    %p119 = por %p117, %p118
    %p120 = scmp.ne.s32.totalorder %s112, %s115
    %p121 = scmp.eq.s32.totalorder %s14, 0
    %p122 = por %p120, %p121
    %p123 = scmp.ne.s32.totalorder %s112, %s115
    %p124 = scmp.eq.s32.totalorder %s19, 3
    %p125 = por %p123, %p124
    %p126 = scmp.ne.s32.totalorder %s115, %s116
    %p127 = scmp.eq.s32.totalorder %s19, 0
    %p128 = por %p126, %p127
    %p129 = scmp.ne.s32.totalorder %s115, %s116
    %p130 = scmp.eq.s32.totalorder %s20, 3
    %p131 = por %p129, %p130
    %p133 = scmp.ne.s32.totalorder %s116, %s132
    %p134 = scmp.eq.s32.totalorder %s20, 0
    %p135 = por %p133, %p134
    %s137 = sadd.s32 %s136, 1
    %p140 = scmp.eq.s32.totalorder %s14, 3
    %p141 = scmp.ne.s32.totalorder %s136, %s138
    %p142 = scmp.eq.s32.totalorder %s14, 0
    %p143 = por %p141, %p142
    %p144 = scmp.ne.s32.totalorder %s136, %s138
    %p145 = scmp.eq.s32.totalorder %s19, 3
    %p146 = por %p144, %p145
    %p147 = scmp.ne.s32.totalorder %s138, %s139
    %p148 = scmp.eq.s32.totalorder %s19, 0
    %p149 = por %p147, %p148
    %p150 = scmp.ne.s32.totalorder %s138, %s139
    %p151 = scmp.eq.s32.totalorder %s20, 3
    %p152 = por %p150, %p151
    %p154 = scmp.ne.s32.totalorder %s139, %s153
    %p155 = scmp.eq.s32.totalorder %s20, 0
    %p156 = por %p154, %p155
    %s158 = sadd.s32 %s157, 1
    %p161 = scmp.eq.s32.totalorder %s14, 3
    %p162 = scmp.ne.s32.totalorder %s157, %s159
    %p163 = scmp.eq.s32.totalorder %s14, 0
    %p164 = por %p162, %p163
    %p165 = scmp.ne.s32.totalorder %s157, %s159
    %p166 = scmp.eq.s32.totalorder %s19, 3
    %p167 = por %p165, %p166
    %p168 = scmp.ne.s32.totalorder %s159, %s160
    %p169 = scmp.eq.s32.totalorder %s19, 0
    %p170 = por %p168, %p169
    %p171 = scmp.ne.s32.totalorder %s159, %s160
    %p172 = scmp.eq.s32.totalorder %s20, 3
    %p173 = por %p171, %p172
    %p175 = scmp.ne.s32.totalorder %s160, %s174
    %p176 = scmp.eq.s32.totalorder %s20, 0
    %p177 = por %p175, %p176
    %s179 = sadd.s32 %s178, 1
    %p182 = scmp.eq.s32.totalorder %s14, 3
    %p183 = scmp.ne.s32.totalorder %s178, %s180
    %p184 = scmp.eq.s32.totalorder %s14, 0
    %p185 = por %p183, %p184
    %p186 = scmp.ne.s32.totalorder %s178, %s180
    %p187 = scmp.eq.s32.totalorder %s19, 3
    %p188 = por %p186, %p187
    %p189 = scmp.ne.s32.totalorder %s180, %s181
    %p190 = scmp.eq.s32.totalorder %s19, 0
    %p191 = por %p189, %p190
    %p192 = scmp.ne.s32.totalorder %s180, %s181
    %p193 = scmp.eq.s32.totalorder %s20, 3
    %p194 = por %p192, %p193
    %p196 = scmp.ne.s32.totalorder %s181, %s195
    %p197 = scmp.eq.s32.totalorder %s20, 0
    %p198 = por %p196, %p197
    %s199 = smul.u32 %s21, 2
    %s200 = sadd.s32 %s199, %s22
    %s201 = smul.u32 %s33, 2
    %s202 = sadd.s32 %s201, %s29
    %s203 = ssub.s32 %s200, %s202
    %p204 = scmp.eq.s32.totalorder %s203, 0
    %s206 = sadd.s32 %s205, 1
    %s207 = scalar_select %p204, %s205, %s206
    %p210 = pneg %p204
    %p211 = scmp.eq.s32.totalorder %s14, 3
    %p212 = por %p210, %p211
    %p213 = scmp.ne.s32.totalorder %s205, %s208
    %p214 = scmp.eq.s32.totalorder %s14, 0
    %p215 = por %p213, %p214
    %p216 = scmp.ne.s32.totalorder %s205, %s208
    %p217 = scmp.eq.s32.totalorder %s19, 3
    %p218 = por %p216, %p217
    %p219 = scmp.ne.s32.totalorder %s208, %s209
    %p220 = scmp.eq.s32.totalorder %s19, 0
    %p221 = por %p219, %p220
    %p222 = scmp.ne.s32.totalorder %s208, %s209
    %p223 = scmp.eq.s32.totalorder %s20, 3
    %p224 = por %p222, %p223
    %p226 = scmp.ne.s32.totalorder %s209, %s225
    %p227 = scmp.eq.s32.totalorder %s20, 0
    %p228 = por %p226, %p227
    %s229 = smul.u32 %s21, 2
    %s230 = sadd.s32 %s229, %s22
    %s231 = smul.u32 %s33, 2
    %s232 = sadd.s32 %s231, %s29
    %s233 = ssub.s32 %s230, %s232
    %p234 = scmp.eq.s32.totalorder %s233, 0
    %s236 = sadd.s32 %s235, 1
    %s237 = scalar_select %p234, %s235, %s236
    %p240 = pneg %p234
    %p241 = scmp.eq.s32.totalorder %s14, 3
    %p242 = por %p240, %p241
    %p243 = scmp.ne.s32.totalorder %s235, %s238
    %p244 = scmp.eq.s32.totalorder %s14, 0
    %p245 = por %p243, %p244
    %p246 = scmp.ne.s32.totalorder %s235, %s238
    %p247 = scmp.eq.s32.totalorder %s19, 3
    %p248 = por %p246, %p247
    %p249 = scmp.ne.s32.totalorder %s238, %s239
    %p250 = scmp.eq.s32.totalorder %s19, 0
    %p251 = por %p249, %p250
    %p252 = scmp.ne.s32.totalorder %s238, %s239
    %p253 = scmp.eq.s32.totalorder %s20, 3
    %p254 = por %p252, %p253
    %p256 = scmp.ne.s32.totalorder %s239, %s255
    %p257 = scmp.eq.s32.totalorder %s20, 0
    %p258 = por %p256, %p257
    %p259 = scmp.le.s32.totalorder 1, %s14
    %p260 = scmp.lt.s32.totalorder %s14, 5
    %p261 = pnand %p259, %p260
    %p262 = pneg %p261
    // Predicated region
    $region9: #{double_conv_forward.3} parent=5 // pred_check
      _
    $region10: #{double_conv_forward.3} parent=5 // pred_check_branch
      %264 = sbr.rel (%p261) target = $region12
    $region11: #{double_conv_forward.3} parent=5 // pred_region
      %s265 = ssub.s32 %s14, 1
      // Predicated region
      $region13: #{double_conv_forward.3} parent=11 // pred_check
        %p266 = pneg %p149
      $region14: #{double_conv_forward.3} parent=11 // pred_check_branch
        %268 = sbr.rel (%p266) target = $region16
      $region15: #{double_conv_forward.3} parent=11 // pred_region
        _
      $region16: #{double_conv_forward.3} parent=11 // pred_fallthru
        _
      // Predicated region
      $region17: #{double_conv_forward.3} parent=11 // pred_check
        %p269 = pneg %p170
      $region18: #{double_conv_forward.3} parent=11 // pred_check_branch
        %271 = sbr.rel (%p269) target = $region20
      $region19: #{double_conv_forward.3} parent=11 // pred_region
        _
      $region20: #{double_conv_forward.3} parent=11 // pred_fallthru
        _
      // Predicated region
      $region21: #{double_conv_forward.3} parent=11 // pred_check
        %p272 = pneg %p191
      $region22: #{double_conv_forward.3} parent=11 // pred_check_branch
        %274 = sbr.rel (%p272) target = $region24
      $region23: #{double_conv_forward.3} parent=11 // pred_region
        _
      $region24: #{double_conv_forward.3} parent=11 // pred_fallthru
        _
    $region12: #{double_conv_forward.3} parent=5 // pred_fallthru
      _
    %p275 = scmp.lt.s32.totalorder %s14, 4
    // Predicated region
    $region25: #{double_conv_forward.3} parent=5 // pred_check
      %p276 = pneg %p275
    $region26: #{double_conv_forward.3} parent=5 // pred_check_branch
      %278 = sbr.rel (%p276) target = $region28
    $region27: #{double_conv_forward.3} parent=5 // pred_region
      // Predicated region
      $region29: #{double_conv_forward.3} parent=27 // pred_check
        %p279 = pneg %p56
      $region30: #{double_conv_forward.3} parent=27 // pred_check_branch
        %281 = sbr.rel (%p279) target = $region32
      $region31: #{double_conv_forward.3} parent=27 // pred_region
        %s282 = smul.u32 %s21, 2
        %s283 = sadd.s32 %s282, %s22
        %s284 = ssub.s32 %s283, 1
        %p285 = scmp.gt.s32.totalorder %s284, 0
        %s286 = scalar_select %p285, %s284, 0
        %p287 = scmp.lt.s32.totalorder %s286, 3
        %s288 = scalar_select %p287, %s286, 3
        %s289 = smul.addr %s288, 8
        %s290 = scalar_lea.vmem %s0, %s289
        %s291 = smul.u32 %s21, 2
        %s292 = sadd.s32 %s291, %s22
        %s293 = ssub.s32 %s292, 1
        %p294 = scmp.gt.s32.totalorder %s293, 0
        %s295 = scalar_select %p294, %s293, 0
      $region32: #{double_conv_forward.3} parent=27 // pred_fallthru
        _
      // Predicated region
      $region33: #{double_conv_forward.3} parent=27 // pred_check
        %p296 = pneg %p86
      $region34: #{double_conv_forward.3} parent=27 // pred_check_branch
        %298 = sbr.rel (%p296) target = $region36
      $region35: #{double_conv_forward.3} parent=27 // pred_region
        %s299 = smul.u32 %s21, 2
        %s300 = sadd.s32 %s299, %s22
        %p301 = scmp.lt.s32.totalorder %s300, 3
        %s302 = scalar_select %p301, %s300, 3
        %s303 = smul.addr %s302, 8
        %s304 = scalar_lea.vmem %s1, %s303
        %s305 = smul.u32 %s21, 2
        %s306 = sadd.s32 %s305, %s22
      $region36: #{double_conv_forward.3} parent=27 // pred_fallthru
        _
      // Predicated region
      $region37: #{double_conv_forward.3} parent=27 // pred_check
        %p307 = pneg %p122
      $region38: #{double_conv_forward.3} parent=27 // pred_check_branch
        %309 = sbr.rel (%p307) target = $region40
      $region39: #{double_conv_forward.3} parent=27 // pred_region
        %s310 = smul.u32 %s21, 2
        %s311 = sadd.s32 %s310, %s22
        %s312 = sadd.s32 %s311, 1
        %p313 = scmp.lt.s32.totalorder %s312, 3
        %s314 = scalar_select %p313, %s312, 3
        %p315 = scmp.lt.s32.totalorder %s314, 3
        %s316 = scalar_select %p315, %s314, 3
        %s317 = smul.addr %s316, 8
        %s318 = scalar_lea.vmem %s2, %s317
        %s319 = smul.u32 %s21, 2
        %s320 = sadd.s32 %s319, %s22
        %s321 = sadd.s32 %s320, 1
        %p322 = scmp.lt.s32.totalorder %s321, 3
        %s323 = scalar_select %p322, %s321, 3
      $region40: #{double_conv_forward.3} parent=27 // pred_fallthru
        _
    $region28: #{double_conv_forward.3} parent=5 // pred_fallthru
      _
    %p324 = scmp.le.s32.totalorder 1, %s14
    %p325 = scmp.lt.s32.totalorder %s14, 5
    %p326 = pnand %p324, %p325
    %p327 = pneg %p326
    // Predicated region
    $region41: #{double_conv_forward.3} parent=5 // pred_check
      _
    $region42: #{double_conv_forward.3} parent=5 // pred_check_branch
      %329 = sbr.rel (%p326) target = $region44
    $region43: #{double_conv_forward.3} parent=5 // pred_region
      %s330 = ssub.s32 %s14, 1
      %s331 = smul.u32 %s23, 2
      %s332 = sadd.s32 %s331, %s24
      %s333 = ssub.s32 %s332, 1
      %p334 = scmp.gt.s32.totalorder %s333, 0
      %s335 = scalar_select %p334, %s333, 0
      %p336 = scmp.lt.s32.totalorder %s335, 3
      %s337 = scalar_select %p336, %s335, 3
      %s338 = smul.addr %s337, 8
      %s339 = scalar_lea.vmem %s0, %s338
      %p340 = pneg %p62
      %p341 = pneg %p59
      %s342 = smul.u32 %s23, 2
      %s343 = sadd.s32 %s342, %s24
      %p344 = scmp.lt.s32.totalorder %s343, 3
      %s345 = scalar_select %p344, %s343, 3
      %s346 = smul.addr %s345, 8
      %s347 = scalar_lea.vmem %s1, %s346
      %p348 = pneg %p92
      %p349 = pneg %p89
      %s350 = smul.u32 %s23, 2
      %s351 = sadd.s32 %s350, %s24
      %s352 = sadd.s32 %s351, 1
      %p353 = scmp.lt.s32.totalorder %s352, 3
      %s354 = scalar_select %p353, %s352, 3
      %p355 = scmp.lt.s32.totalorder %s354, 3
      %s356 = scalar_select %p355, %s354, 3
      %s357 = smul.addr %s356, 8
      %s358 = scalar_lea.vmem %s2, %s357
      %p359 = pneg %p128
      %p360 = pneg %p125
      %p361 = pneg %p149
      %p362 = pneg %p146
      %p363 = pneg %p170
      %p364 = pneg %p167
      %p365 = pneg %p191
      %p366 = pneg %p188
      %p367 = pneg %p221
      %p368 = pneg %p218
      %s369 = smul.u32 %s23, 2
      %s370 = sadd.s32 %s369, %s24
      %p371 = scmp.lt.s32.totalorder %s370, 3
      %s372 = scalar_select %p371, %s370, 3
      %s373 = smul.addr %s372, 8
      %s374 = scalar_lea.vmem %s6, %s373
      %p375 = pneg %p251
      %p376 = pneg %p248
      %s377 = smul.u32 %s23, 2
      %s378 = sadd.s32 %s377, %s24
      %p379 = scmp.lt.s32.totalorder %s378, 3
      %s380 = scalar_select %p379, %s378, 3
      %s381 = smul.addr %s380, 2
      %s382 = scalar_lea.vmem %s7, %s381
      %s383 = smul.u32 %s23, 2
      %s384 = sadd.s32 %s383, %s24
      %s385 = ssub.s32 %s384, 1
      %p386 = scmp.gt.s32.totalorder %s385, 0
      %s387 = scalar_select %p386, %s385, 0
      %p388 = scmp.lt.s32.totalorder %s387, 3
      %s389 = scalar_select %p388, %s387, 3
      %s390 = smul.addr %s389, 8
      %s391 = scalar_lea.vmem %s0, %s390
      %s392 = smul.u32 %s23, 2
      %s393 = sadd.s32 %s392, %s24
      %s394 = ssub.s32 %s393, 1
      %p395 = scmp.gt.s32.totalorder %s394, 0
      %s396 = scalar_select %p395, %s394, 0
      %s397 = smul.u32 %s23, 2
      %s398 = sadd.s32 %s397, %s24
      %p399 = scmp.lt.s32.totalorder %s398, 3
      %s400 = scalar_select %p399, %s398, 3
      %s401 = smul.addr %s400, 8
      %s402 = scalar_lea.vmem %s1, %s401
      %s403 = smul.u32 %s23, 2
      %s404 = sadd.s32 %s403, %s24
      %s405 = smul.u32 %s23, 2
      %s406 = sadd.s32 %s405, %s24
      %s407 = sadd.s32 %s406, 1
      %p408 = scmp.lt.s32.totalorder %s407, 3
      %s409 = scalar_select %p408, %s407, 3
      %p410 = scmp.lt.s32.totalorder %s409, 3
      %s411 = scalar_select %p410, %s409, 3
      %s412 = smul.addr %s411, 8
      %s413 = scalar_lea.vmem %s2, %s412
      %s414 = smul.u32 %s23, 2
      %s415 = sadd.s32 %s414, %s24
      %s416 = sadd.s32 %s415, 1
      %p417 = scmp.lt.s32.totalorder %s416, 3
      %s418 = scalar_select %p417, %s416, 3
      %s419 = smul.u32 %s23, 2
      %s420 = sadd.s32 %s419, %s24
      %p421 = scmp.lt.s32.totalorder %s420, 3
      %s422 = scalar_select %p421, %s420, 3
      %s423 = smul.addr %s422, 8
      %s424 = scalar_lea.vmem %s6, %s423
      %s425 = smul.u32 %s23, 2
      %s426 = sadd.s32 %s425, %s24
      %s427 = smul.u32 %s23, 2
      %s428 = sadd.s32 %s427, %s24
      %p429 = scmp.lt.s32.totalorder %s428, 3
      %s430 = scalar_select %p429, %s428, 3
      %s431 = smul.addr %s430, 2
      %s432 = scalar_lea.vmem %s7, %s431
      %s433 = smul.u32 %s23, 2
      %s434 = sadd.s32 %s433, %s24
      %p435 = scmp.eq.s32.totalorder %s24, 0
      %v436 = vld [vmem:[%s391 + $0x7] sm:$0x1]
      %s437 = scalar_select %p435, 1, 0
      %v438 = vstv %s437
      %vm439 = vcmp.eq.s32.totalorder %v438, 1
      %v440 = vsel %vm439, 0.0, %v436
      %p441 = scmp.eq.s32.totalorder %s24, 1
      %v442 = vld [vmem:[%s413] sm:$0x1]
      %s443 = scalar_select %p441, 1, 0
      %v444 = vstv %s443
      %vm445 = vcmp.eq.s32.totalorder %v444, 1
      %v446 = vsel %vm445, 0.0, %v442
      %v447 = vld [vmem:[%s402] sm:$0xff]
      %v449 = vrot.slane %v447, 7
      %v452 = vrot.slane %v446, 7
      %vm454 = vcmask 1040384
      %v455 = vsel %vm454, %v440, %v449
      %v456 = vsel %vm454, %v449, %v452
      %v457 = vld [vmem:[%s3] sm:$0xff]
      %v458 = vld [vmem:[%s3 + $0x8] sm:$0xff]
      %v459 = vld [vmem:[%s3 + $0x10] sm:$0xff]
      %v460 = vld [vmem:[%s3 + $0x18] sm:$0xff]
      %v461 = vld [vmem:[%s3 + $0x20] sm:$0xff]
      %v462 = vld [vmem:[%s3 + $0x28] sm:$0xff]
      %v463 = vld [vmem:[%s3 + $0x30] sm:$0xff]
      %v464 = vld [vmem:[%s3 + $0x38] sm:$0xff]
      %s465 = scalar_lea.vmem %s3, 64
      %v466 = vld [vmem:[%s465] sm:$0xff]
      %v467 = vld [vmem:[%s465 + $0x8] sm:$0xff]
      %v468 = vld [vmem:[%s465 + $0x10] sm:$0xff]
      %v469 = vld [vmem:[%s465 + $0x18] sm:$0xff]
      %v470 = vld [vmem:[%s465 + $0x20] sm:$0xff]
      %v471 = vld [vmem:[%s465 + $0x28] sm:$0xff]
      %v472 = vld [vmem:[%s465 + $0x30] sm:$0xff]
      %v473 = vld [vmem:[%s465 + $0x38] sm:$0xff]
      %vm476 = vcmask 1046528
      %v477 = vrot.slane %v455, 1
      %v478 = vrot.slane %v456, 1
      %v479 = vsel %vm476, %v477, %v478
      %vm480 = vcmask 523264
      %v481 = vsel %vm480, %v479, 0
      %483 = vmatprep.subr.mxu0 0.0
      %484 = vmatpush1.msra.mxu0 0.0
      %485 = vmatprep.subr.mxu0 0.0
      %486 = vmatpush1.msra.mxu0 0.0
      %487 = vmatprep.subr.mxu0 0.0
      %488 = vmatpush1.msra.mxu0 0.0
      %489 = vmatprep.subr.mxu0 0.0
      %490 = vmatpush1.msra.mxu0 0.0
      %491 = vmatprep.subr.mxu0 0.0
      %492 = vmatpush1.msra.mxu0 0.0
      %493 = vmatprep.subr.mxu0 0.0
      %494 = vmatpush1.msra.mxu0 0.0
      %495 = vmatprep.subr.mxu0 0.0
      %496 = vmatpush1.msra.mxu0 0.0
      %497 = vmatprep.subr.mxu0 0.0
      %498 = vmatpush1.msra.mxu0 0.0
      %499 = vmatprep.subr.mxu0 0.0
      %500 = vmatpush1.msra.mxu0 %v473
      %501 = vmatprep.subr.mxu0 0.0
      %502 = vmatpush1.msra.mxu0 %v472
      %503 = vmatprep.subr.mxu0 0.0
      %504 = vmatpush1.msra.mxu0 %v471
      %505 = vmatprep.subr.mxu0 0.0
      %506 = vmatpush1.msra.mxu0 %v470
      %507 = vmatprep.subr.mxu0 0.0
      %508 = vmatpush1.msra.mxu0 %v469
      %509 = vmatprep.subr.mxu0 0.0
      %510 = vmatpush1.msra.mxu0 %v468
      %511 = vmatprep.subr.mxu0 0.0
      %512 = vmatpush1.msra.mxu0 %v467
      %513 = vmatprep.subr.mxu0 0.0
      %514 = vmatpush1.msra.mxu0 %v466
      %515 = vmatprep.subr.mxu0 0.0
      %516 = vmatpush2.msra.mxu0 0.0
      %517 = vmatprep.subr.mxu0 0.0
      %518 = vmatpush2.msra.mxu0 0.0
      %519 = vmatprep.subr.mxu0 0.0
      %520 = vmatpush2.msra.mxu0 0.0
      %521 = vmatprep.subr.mxu0 0.0
      %522 = vmatpush2.msra.mxu0 0.0
      %523 = vmatprep.subr.mxu0 0.0
      %524 = vmatpush2.msra.mxu0 0.0
      %525 = vmatprep.subr.mxu0 0.0
      %526 = vmatpush2.msra.mxu0 0.0
      %527 = vmatprep.subr.mxu0 0.0
      %528 = vmatpush2.msra.mxu0 0.0
      %529 = vmatprep.subr.mxu0 0.0
      %530 = vmatpush2.msra.mxu0 0.0
      %531 = vmatprep.subr.mxu0 0.0
      %532 = vmatpush2.msra.mxu0 0.0
      %533 = vmatprep.subr.mxu0 0.0
      %534 = vmatpush2.msra.mxu0 0.0
      %535 = vmatprep.subr.mxu0 0.0
      %536 = vmatpush2.msra.mxu0 0.0
      %537 = vmatprep.subr.mxu0 0.0
      %538 = vmatpush2.msra.mxu0 0.0
      %539 = vmatprep.subr.mxu0 0.0
      %540 = vmatpush2.msra.mxu0 0.0
      %541 = vmatprep.subr.mxu0 0.0
      %542 = vmatpush2.msra.mxu0 0.0
      %543 = vmatprep.subr.mxu0 0.0
      %544 = vmatpush2.msra.mxu0 0.0
      %545 = vmatprep.subr.mxu0 0.0
      %546 = vmatpush2.msra.mxu0 0.0
      %547 = vmatprep.mubr.f32.mxu0 0.0
      %548 = vmatmul.mubr.f32.gmra.mxu0 %v481
      %v549 = vpop.f32.mrf.mxu0
      %v550 = vadd.f32 0.0, %v549
      %v551 = vpop.f32.mrf.mxu0
      %552 = vdwg.mxu0
      %v553 = vsel %vm480, %v455, 0
      %555 = vmatprep.subr.mxu0 0.0
      %556 = vmatpush1.msra.mxu0 0.0
      %557 = vmatprep.subr.mxu0 0.0
      %558 = vmatpush1.msra.mxu0 0.0
      %559 = vmatprep.subr.mxu0 0.0
      %560 = vmatpush1.msra.mxu0 0.0
      %561 = vmatprep.subr.mxu0 0.0
      %562 = vmatpush1.msra.mxu0 0.0
      %563 = vmatprep.subr.mxu0 0.0
      %564 = vmatpush1.msra.mxu0 0.0
      %565 = vmatprep.subr.mxu0 0.0
      %566 = vmatpush1.msra.mxu0 0.0
      %567 = vmatprep.subr.mxu0 0.0
      %568 = vmatpush1.msra.mxu0 0.0
      %569 = vmatprep.subr.mxu0 0.0
      %570 = vmatpush1.msra.mxu0 0.0
      %571 = vmatprep.subr.mxu0 0.0
      %572 = vmatpush1.msra.mxu0 %v464
      %573 = vmatprep.subr.mxu0 0.0
      %574 = vmatpush1.msra.mxu0 %v463
      %575 = vmatprep.subr.mxu0 0.0
      %576 = vmatpush1.msra.mxu0 %v462
      %577 = vmatprep.subr.mxu0 0.0
      %578 = vmatpush1.msra.mxu0 %v461
      %579 = vmatprep.subr.mxu0 0.0
      %580 = vmatpush1.msra.mxu0 %v460
      %581 = vmatprep.subr.mxu0 0.0
      %582 = vmatpush1.msra.mxu0 %v459
      %583 = vmatprep.subr.mxu0 0.0
      %584 = vmatpush1.msra.mxu0 %v458
      %585 = vmatprep.subr.mxu0 0.0
      %586 = vmatpush1.msra.mxu0 %v457
      %587 = vmatprep.subr.mxu0 0.0
      %588 = vmatpush2.msra.mxu0 0.0
      %589 = vmatprep.subr.mxu0 0.0
      %590 = vmatpush2.msra.mxu0 0.0
      %591 = vmatprep.subr.mxu0 0.0
      %592 = vmatpush2.msra.mxu0 0.0
      %593 = vmatprep.subr.mxu0 0.0
      %594 = vmatpush2.msra.mxu0 0.0
      %595 = vmatprep.subr.mxu0 0.0
      %596 = vmatpush2.msra.mxu0 0.0
      %597 = vmatprep.subr.mxu0 0.0
      %598 = vmatpush2.msra.mxu0 0.0
      %599 = vmatprep.subr.mxu0 0.0
      %600 = vmatpush2.msra.mxu0 0.0
      %601 = vmatprep.subr.mxu0 0.0
      %602 = vmatpush2.msra.mxu0 0.0
      %603 = vmatprep.subr.mxu0 0.0
      %604 = vmatpush2.msra.mxu0 0.0
      %605 = vmatprep.subr.mxu0 0.0
      %606 = vmatpush2.msra.mxu0 0.0
      %607 = vmatprep.subr.mxu0 0.0
      %608 = vmatpush2.msra.mxu0 0.0
      %609 = vmatprep.subr.mxu0 0.0
      %610 = vmatpush2.msra.mxu0 0.0
      %611 = vmatprep.subr.mxu0 0.0
      %612 = vmatpush2.msra.mxu0 0.0
      %613 = vmatprep.subr.mxu0 0.0
      %614 = vmatpush2.msra.mxu0 0.0
      %615 = vmatprep.subr.mxu0 0.0
      %616 = vmatpush2.msra.mxu0 0.0
      %617 = vmatprep.subr.mxu0 0.0
      %618 = vmatpush2.msra.mxu0 0.0
      %619 = vmatprep.mubr.f32.mxu0 0.0
      %620 = vmatmul.mubr.f32.gmra.mxu0 %v553
      %v621 = vpop.f32.mrf.mxu0
      %v622 = vadd.f32 %v550, %v621
      %v623 = vpop.f32.mrf.mxu0
      %624 = vdwg.mxu0
      %s625 = scalar_lea.vmem %s3, 128
      %v626 = vld [vmem:[%s625] sm:$0xff]
      %v627 = vld [vmem:[%s625 + $0x8] sm:$0xff]
      %v628 = vld [vmem:[%s625 + $0x10] sm:$0xff]
      %v629 = vld [vmem:[%s625 + $0x18] sm:$0xff]
      %v630 = vld [vmem:[%s625 + $0x20] sm:$0xff]
      %v631 = vld [vmem:[%s625 + $0x28] sm:$0xff]
      %v632 = vld [vmem:[%s625 + $0x30] sm:$0xff]
      %v633 = vld [vmem:[%s625 + $0x38] sm:$0xff]
      %vm634 = vcmask 1045504
      %v635 = vrot.slane %v455, 2
      %v636 = vrot.slane %v456, 2
      %v637 = vsel %vm634, %v635, %v636
      %v638 = vsel %vm480, %v637, 0
      %640 = vmatprep.subr.mxu0 0.0
      %641 = vmatpush1.msra.mxu0 0.0
      %642 = vmatprep.subr.mxu0 0.0
      %643 = vmatpush1.msra.mxu0 0.0
      %644 = vmatprep.subr.mxu0 0.0
      %645 = vmatpush1.msra.mxu0 0.0
      %646 = vmatprep.subr.mxu0 0.0
      %647 = vmatpush1.msra.mxu0 0.0
      %648 = vmatprep.subr.mxu0 0.0
      %649 = vmatpush1.msra.mxu0 0.0
      %650 = vmatprep.subr.mxu0 0.0
      %651 = vmatpush1.msra.mxu0 0.0
      %652 = vmatprep.subr.mxu0 0.0
      %653 = vmatpush1.msra.mxu0 0.0
      %654 = vmatprep.subr.mxu0 0.0
      %655 = vmatpush1.msra.mxu0 0.0
      %656 = vmatprep.subr.mxu0 0.0
      %657 = vmatpush1.msra.mxu0 %v633
      %658 = vmatprep.subr.mxu0 0.0
      %659 = vmatpush1.msra.mxu0 %v632
      %660 = vmatprep.subr.mxu0 0.0
      %661 = vmatpush1.msra.mxu0 %v631
      %662 = vmatprep.subr.mxu0 0.0
      %663 = vmatpush1.msra.mxu0 %v630
      %664 = vmatprep.subr.mxu0 0.0
      %665 = vmatpush1.msra.mxu0 %v629
      %666 = vmatprep.subr.mxu0 0.0
      %667 = vmatpush1.msra.mxu0 %v628
      %668 = vmatprep.subr.mxu0 0.0
      %669 = vmatpush1.msra.mxu0 %v627
      %670 = vmatprep.subr.mxu0 0.0
      %671 = vmatpush1.msra.mxu0 %v626
      %672 = vmatprep.subr.mxu0 0.0
      %673 = vmatpush2.msra.mxu0 0.0
      %674 = vmatprep.subr.mxu0 0.0
      %675 = vmatpush2.msra.mxu0 0.0
      %676 = vmatprep.subr.mxu0 0.0
      %677 = vmatpush2.msra.mxu0 0.0
      %678 = vmatprep.subr.mxu0 0.0
      %679 = vmatpush2.msra.mxu0 0.0
      %680 = vmatprep.subr.mxu0 0.0
      %681 = vmatpush2.msra.mxu0 0.0
      %682 = vmatprep.subr.mxu0 0.0
      %683 = vmatpush2.msra.mxu0 0.0
      %684 = vmatprep.subr.mxu0 0.0
      %685 = vmatpush2.msra.mxu0 0.0
      %686 = vmatprep.subr.mxu0 0.0
      %687 = vmatpush2.msra.mxu0 0.0
      %688 = vmatprep.subr.mxu0 0.0
      %689 = vmatpush2.msra.mxu0 0.0
      %690 = vmatprep.subr.mxu0 0.0
      %691 = vmatpush2.msra.mxu0 0.0
      %692 = vmatprep.subr.mxu0 0.0
      %693 = vmatpush2.msra.mxu0 0.0
      %694 = vmatprep.subr.mxu0 0.0
      %695 = vmatpush2.msra.mxu0 0.0
      %696 = vmatprep.subr.mxu0 0.0
      %697 = vmatpush2.msra.mxu0 0.0
      %698 = vmatprep.subr.mxu0 0.0
      %699 = vmatpush2.msra.mxu0 0.0
      %700 = vmatprep.subr.mxu0 0.0
      %701 = vmatpush2.msra.mxu0 0.0
      %702 = vmatprep.subr.mxu0 0.0
      %703 = vmatpush2.msra.mxu0 0.0
      %704 = vmatprep.mubr.f32.mxu0 0.0
      %705 = vmatmul.mubr.f32.gmra.mxu0 %v638
      %v706 = vpop.f32.mrf.mxu0
      %v707 = vadd.f32 0.0, %v706
      %v708 = vpop.f32.mrf.mxu0
      %709 = vdwg.mxu0
      %v710 = vadd.f32 %v622, %v707
      %711 = vst [vmem:[%s424] sm:$0xff] %v710
      %v712 = vrot.slane %v710, 4
      %v713 = vadd.f32 %v710, %v712
      %v714 = vrot.slane %v713, 2
      %v715 = vadd.f32 %v713, %v714
      %v716 = vrot.slane %v715, 1
      %v717 = vadd.f32 %v715, %v716
      %v718 = vmul.f32 %v710, %v710
      %v719 = vrot.slane %v718, 4
      %v720 = vadd.f32 %v718, %v719
      %v721 = vrot.slane %v720, 2
      %v722 = vadd.f32 %v720, %v721
      %v723 = vrot.slane %v722, 1
      %v724 = vadd.f32 %v722, %v723
      %v725 = vsel %vm454, %v717, %v724
      %726 = vst [vmem:[%s432] sm:$0x3] %v725
      %s727 = smul.u32 %s23, 2
      %s728 = sadd.s32 %s727, %s24
      %p729 = scmp.lt.s32.totalorder %s728, 3
      %s730 = scalar_select %p729, %s728, 3
      %s731 = smul.addr %s730, 8
      %s732 = scalar_lea.vmem %s6, %s731
      %s733 = smul.u32 %s23, 2
      %s734 = sadd.s32 %s733, %s24
      %p735 = scmp.lt.s32.totalorder %s734, 3
      %s736 = scalar_select %p735, %s734, 3
      %s737 = smul.addr %s736, 2
      %s738 = scalar_lea.vmem %s7, %s737
      // Predicated region
      $region45: #{double_conv_forward.3} parent=43 // pred_check
        %p739 = pneg %p218
      $region46: #{double_conv_forward.3} parent=43 // pred_check_branch
        %741 = sbr.rel (%p739) target = $region48
      $region47: #{double_conv_forward.3} parent=43 // pred_region
        %s742 = smul.u32 %s23, 2
        %s743 = sadd.s32 %s742, %s24
      $region48: #{double_conv_forward.3} parent=43 // pred_fallthru
        _
      // Predicated region
      $region49: #{double_conv_forward.3} parent=43 // pred_check
        %p744 = pneg %p248
      $region50: #{double_conv_forward.3} parent=43 // pred_check_branch
        %746 = sbr.rel (%p744) target = $region52
      $region51: #{double_conv_forward.3} parent=43 // pred_region
        %s747 = smul.u32 %s23, 2
        %s748 = sadd.s32 %s747, %s24
      $region52: #{double_conv_forward.3} parent=43 // pred_fallthru
        _
    $region44: #{double_conv_forward.3} parent=5 // pred_fallthru
      _
    %p749 = scmp.le.s32.totalorder 2, %s14
    // Predicated region
    $region53: #{double_conv_forward.3} parent=5 // pred_check
      %p750 = pneg %p749
    $region54: #{double_conv_forward.3} parent=5 // pred_check_branch
      %752 = sbr.rel (%p750) target = $region56
    $region55: #{double_conv_forward.3} parent=5 // pred_region
      %s753 = ssub.s32 %s14, 2
      // Predicated region
      $region57: #{double_conv_forward.3} parent=55 // pred_check
        %p754 = pneg %p224
      $region58: #{double_conv_forward.3} parent=55 // pred_check_branch
        %756 = sbr.rel (%p754) target = $region60
      $region59: #{double_conv_forward.3} parent=55 // pred_region
        %s757 = smul.u32 %s25, 2
        %s758 = sadd.s32 %s757, %s26
        %p759 = scmp.lt.s32.totalorder %s758, 3
        %s760 = scalar_select %p759, %s758, 3
        %s761 = smul.addr %s760, 8
        %s762 = scalar_lea.vmem %s6, %s761
      $region60: #{double_conv_forward.3} parent=55 // pred_fallthru
        _
      // Predicated region
      $region61: #{double_conv_forward.3} parent=55 // pred_check
        %p763 = pneg %p254
      $region62: #{double_conv_forward.3} parent=55 // pred_check_branch
        %765 = sbr.rel (%p763) target = $region64
      $region63: #{double_conv_forward.3} parent=55 // pred_region
        %s766 = smul.u32 %s25, 2
        %s767 = sadd.s32 %s766, %s26
        %p768 = scmp.lt.s32.totalorder %s767, 3
        %s769 = scalar_select %p768, %s767, 3
        %s770 = smul.addr %s769, 2
        %s771 = scalar_lea.vmem %s7, %s770
      $region64: #{double_conv_forward.3} parent=55 // pred_fallthru
        _
    $region56: #{double_conv_forward.3} parent=5 // pred_fallthru
      _
  $region6: #{double_conv_forward.3} parent=0 // loop_footer
    %s18 = sadd.s32 1, %s14
  $region7: #{double_conv_forward.3} parent=0 // loop_footer_branch
    %13 = sbr.rel target = $region3
  $region8: #{double_conv_forward.3} parent=0 // loop_exit
    _

// kernel: double_conv_forward.4
$region0: #{double_conv_forward.4}
  #allocation0 [shape = 'u32[]', space=smem, size = 0x4, offset = 0x4, fixed_abs, tag = 'smem constant byte address 0x4 - core index']
  #allocation1 [shape = 'u32[144,128]{1,0:T(1,128)}', space=vmem, size = 0x12000, scoped, tag = 'internal scratch']
  %s0 = inlined_call_operand.vmem [shape: f32[32,128], index: 0, kind: input, shape index: {}, may-alias: {0,1,2}]
  %s1 = inlined_call_operand.vmem [shape: f32[32,128], index: 1, kind: input, shape index: {}, may-alias: {0,1,2}]
  %s2 = inlined_call_operand.vmem [shape: f32[32,128], index: 2, kind: input, shape index: {}, may-alias: {0,1,2}]
  %s3 = inlined_call_operand.vmem [shape: f32[3,128,128], index: 3, kind: input, shape index: {}]
  %s4 = inlined_call_operand.vmem [shape: f32[1,128], index: 4, kind: input, shape index: {}]
  %s5 = inlined_call_operand.vmem [shape: f32[1,128], index: 5, kind: input, shape index: {}]
  %s6 = inlined_call_operand.vmem [shape: f32[32,128], index: 6, kind: output, shape index: {0}]
  %s7 = inlined_call_operand.vmem [shape: f32[4,2,128], index: 7, kind: output, shape index: {1}]
  %8 = xla_tuple %s6, %s7
  %s9 = sld [smem:[#allocation0]]
  $region65: #{double_conv_forward.4} parent=0
    _
  %s11 = ssub.s32 1, %s9
  %s12 = scalar_select 0, %s11, %s9
  loop: start=0, step=1, limit=6
  $region2: #{double_conv_forward.4} parent=0 // loop_pre_header
    _
  $region3: #{double_conv_forward.4} parent=0 // loop_header
    %s14 = sphi 0, %s18
    %p15 = scmp.ge.s32.totalorder %s14, 6
    %s21 = sphi 0, %s33
    %s22 = sphi 0, %s29
    %s23 = sphi 0, %s21
    %s24 = sphi 0, %s22
    %s25 = sphi 0, %s23
    %s26 = sphi 0, %s24
    %s46 = sphi 0, %s48
    %s49 = sphi 0, %s46
    %s50 = sphi 0, %s49
    %s66 = sphi 0, %s50
    %s76 = sphi 0, %s78
    %s79 = sphi 0, %s76
    %s80 = sphi 0, %s79
    %s96 = sphi 0, %s80
    %s112 = sphi 0, %s114
    %s115 = sphi 0, %s112
    %s116 = sphi 0, %s115
    %s132 = sphi 0, %s116
    %s136 = sphi 0, %s136
    %s138 = sphi 0, %s136
    %s139 = sphi 0, %s138
    %s153 = sphi 0, %s139
    %s157 = sphi 0, %s157
    %s159 = sphi 0, %s157
    %s160 = sphi 0, %s159
    %s174 = sphi 0, %s160
    %s178 = sphi 0, %s178
    %s180 = sphi 0, %s178
    %s181 = sphi 0, %s180
    %s195 = sphi 0, %s181
    %s205 = sphi 0, %s207
    %s208 = sphi 0, %s205
    %s209 = sphi 0, %s208
    %s225 = sphi 0, %s209
    %s235 = sphi 0, %s237
    %s238 = sphi 0, %s235
    %s239 = sphi 0, %s238
    %s255 = sphi 0, %s239
  $region4: #{double_conv_forward.4} parent=0 // loop_header_branch
    %17 = sbr.rel (%p15) target = $region8
  $region5: #{double_conv_forward.4} parent=0 // loop_body
    %s19 = ssub.s32 %s14, 1
    %s20 = ssub.s32 %s14, 2
    %s27 = sadd.s32 1, %s22
    %p28 = scmp.ge.s32.totalorder %s27, 2
    %s29 = scalar_select %p28, 0, %s27
    %s30 = sadd.s32 1, %s21
    %s31 = scalar_select %p28, %s30, %s21
    %p32 = scmp.ge.s32.totalorder %s31, 2
    %s33 = scalar_select %p32, 0, %s31
    %s34 = smul.u32 %s21, 2
    %s35 = sadd.s32 %s34, %s22
    %s36 = ssub.s32 %s35, 1
    %p37 = scmp.gt.s32.totalorder %s36, 0
    %s38 = scalar_select %p37, %s36, 0
    %s39 = smul.u32 %s33, 2
    %s40 = sadd.s32 %s39, %s29
    %s41 = ssub.s32 %s40, 1
    %p42 = scmp.gt.s32.totalorder %s41, 0
    %s43 = scalar_select %p42, %s41, 0
    %s44 = ssub.s32 %s38, %s43
    %p45 = scmp.eq.s32.totalorder %s44, 0
    %s47 = sadd.s32 %s46, 1
    %s48 = scalar_select %p45, %s46, %s47
    %p51 = pneg %p45
    %p52 = scmp.eq.s32.totalorder %s14, 3
    %p53 = por %p51, %p52
    %p54 = scmp.ne.s32.totalorder %s46, %s49
    %p55 = scmp.eq.s32.totalorder %s14, 0
    %p56 = por %p54, %p55
    %p57 = scmp.ne.s32.totalorder %s46, %s49
    %p58 = scmp.eq.s32.totalorder %s19, 3
    %p59 = por %p57, %p58
    %p60 = scmp.ne.s32.totalorder %s49, %s50
    %p61 = scmp.eq.s32.totalorder %s19, 0
    %p62 = por %p60, %p61
    %p63 = scmp.ne.s32.totalorder %s49, %s50
    %p64 = scmp.eq.s32.totalorder %s20, 3
    %p65 = por %p63, %p64
    %p67 = scmp.ne.s32.totalorder %s50, %s66
    %p68 = scmp.eq.s32.totalorder %s20, 0
    %p69 = por %p67, %p68
    %s70 = smul.u32 %s21, 2
    %s71 = sadd.s32 %s70, %s22
    %s72 = smul.u32 %s33, 2
    %s73 = sadd.s32 %s72, %s29
    %s74 = ssub.s32 %s71, %s73
    %p75 = scmp.eq.s32.totalorder %s74, 0
    %s77 = sadd.s32 %s76, 1
    %s78 = scalar_select %p75, %s76, %s77
    %p81 = pneg %p75
    %p82 = scmp.eq.s32.totalorder %s14, 3
    %p83 = por %p81, %p82
    %p84 = scmp.ne.s32.totalorder %s76, %s79
    %p85 = scmp.eq.s32.totalorder %s14, 0
    %p86 = por %p84, %p85
    %p87 = scmp.ne.s32.totalorder %s76, %s79
    %p88 = scmp.eq.s32.totalorder %s19, 3
    %p89 = por %p87, %p88
    %p90 = scmp.ne.s32.totalorder %s79, %s80
    %p91 = scmp.eq.s32.totalorder %s19, 0
    %p92 = por %p90, %p91
    %p93 = scmp.ne.s32.totalorder %s79, %s80
    %p94 = scmp.eq.s32.totalorder %s20, 3
    %p95 = por %p93, %p94
    %p97 = scmp.ne.s32.totalorder %s80, %s96
    %p98 = scmp.eq.s32.totalorder %s20, 0
    %p99 = por %p97, %p98
    %s100 = smul.u32 %s21, 2
    %s101 = sadd.s32 %s100, %s22
    %s102 = sadd.s32 %s101, 1
    %p103 = scmp.lt.s32.totalorder %s102, 3
    %s104 = scalar_select %p103, %s102, 3
    %s105 = smul.u32 %s33, 2
    %s106 = sadd.s32 %s105, %s29
    %s107 = sadd.s32 %s106, 1
    %p108 = scmp.lt.s32.totalorder %s107, 3
    %s109 = scalar_select %p108, %s107, 3
    %s110 = ssub.s32 %s104, %s109
    %p111 = scmp.eq.s32.totalorder %s110, 0
    %s113 = sadd.s32 %s112, 1
    %s114 = scalar_select %p111, %s112, %s113
    %p117 = pneg %p111
    %p118 = scmp.eq.s32.totalorder %s14, 3
    %p119 = por %p117, %p118
    %p120 = scmp.ne.s32.totalorder %s112, %s115
    %p121 = scmp.eq.s32.totalorder %s14, 0
    %p122 = por %p120, %p121
    %p123 = scmp.ne.s32.totalorder %s112, %s115
    %p124 = scmp.eq.s32.totalorder %s19, 3
    %p125 = por %p123, %p124
    %p126 = scmp.ne.s32.totalorder %s115, %s116
    %p127 = scmp.eq.s32.totalorder %s19, 0
    %p128 = por %p126, %p127
    %p129 = scmp.ne.s32.totalorder %s115, %s116
    %p130 = scmp.eq.s32.totalorder %s20, 3
    %p131 = por %p129, %p130
    %p133 = scmp.ne.s32.totalorder %s116, %s132
    %p134 = scmp.eq.s32.totalorder %s20, 0
    %p135 = por %p133, %p134
    %s137 = sadd.s32 %s136, 1
    %p140 = scmp.eq.s32.totalorder %s14, 3
    %p141 = scmp.ne.s32.totalorder %s136, %s138
    %p142 = scmp.eq.s32.totalorder %s14, 0
    %p143 = por %p141, %p142
    %p144 = scmp.ne.s32.totalorder %s136, %s138
    %p145 = scmp.eq.s32.totalorder %s19, 3
    %p146 = por %p144, %p145
    %p147 = scmp.ne.s32.totalorder %s138, %s139
    %p148 = scmp.eq.s32.totalorder %s19, 0
    %p149 = por %p147, %p148
    %p150 = scmp.ne.s32.totalorder %s138, %s139
    %p151 = scmp.eq.s32.totalorder %s20, 3
    %p152 = por %p150, %p151
    %p154 = scmp.ne.s32.totalorder %s139, %s153
    %p155 = scmp.eq.s32.totalorder %s20, 0
    %p156 = por %p154, %p155
    %s158 = sadd.s32 %s157, 1
    %p161 = scmp.eq.s32.totalorder %s14, 3
    %p162 = scmp.ne.s32.totalorder %s157, %s159
    %p163 = scmp.eq.s32.totalorder %s14, 0
    %p164 = por %p162, %p163
    %p165 = scmp.ne.s32.totalorder %s157, %s159
    %p166 = scmp.eq.s32.totalorder %s19, 3
    %p167 = por %p165, %p166
    %p168 = scmp.ne.s32.totalorder %s159, %s160
    %p169 = scmp.eq.s32.totalorder %s19, 0
    %p170 = por %p168, %p169
    %p171 = scmp.ne.s32.totalorder %s159, %s160
    %p172 = scmp.eq.s32.totalorder %s20, 3
    %p173 = por %p171, %p172
    %p175 = scmp.ne.s32.totalorder %s160, %s174
    %p176 = scmp.eq.s32.totalorder %s20, 0
    %p177 = por %p175, %p176
    %s179 = sadd.s32 %s178, 1
    %p182 = scmp.eq.s32.totalorder %s14, 3
    %p183 = scmp.ne.s32.totalorder %s178, %s180
    %p184 = scmp.eq.s32.totalorder %s14, 0
    %p185 = por %p183, %p184
    %p186 = scmp.ne.s32.totalorder %s178, %s180
    %p187 = scmp.eq.s32.totalorder %s19, 3
    %p188 = por %p186, %p187
    %p189 = scmp.ne.s32.totalorder %s180, %s181
    %p190 = scmp.eq.s32.totalorder %s19, 0
    %p191 = por %p189, %p190
    %p192 = scmp.ne.s32.totalorder %s180, %s181
    %p193 = scmp.eq.s32.totalorder %s20, 3
    %p194 = por %p192, %p193
    %p196 = scmp.ne.s32.totalorder %s181, %s195
    %p197 = scmp.eq.s32.totalorder %s20, 0
    %p198 = por %p196, %p197
    %s199 = smul.u32 %s21, 2
    %s200 = sadd.s32 %s199, %s22
    %s201 = smul.u32 %s33, 2
    %s202 = sadd.s32 %s201, %s29
    %s203 = ssub.s32 %s200, %s202
    %p204 = scmp.eq.s32.totalorder %s203, 0
    %s206 = sadd.s32 %s205, 1
    %s207 = scalar_select %p204, %s205, %s206
    %p210 = pneg %p204
    %p211 = scmp.eq.s32.totalorder %s14, 3
    %p212 = por %p210, %p211
    %p213 = scmp.ne.s32.totalorder %s205, %s208
    %p214 = scmp.eq.s32.totalorder %s14, 0
    %p215 = por %p213, %p214
    %p216 = scmp.ne.s32.totalorder %s205, %s208
    %p217 = scmp.eq.s32.totalorder %s19, 3
    %p218 = por %p216, %p217
    %p219 = scmp.ne.s32.totalorder %s208, %s209
    %p220 = scmp.eq.s32.totalorder %s19, 0
    %p221 = por %p219, %p220
    %p222 = scmp.ne.s32.totalorder %s208, %s209
    %p223 = scmp.eq.s32.totalorder %s20, 3
    %p224 = por %p222, %p223
    %p226 = scmp.ne.s32.totalorder %s209, %s225
    %p227 = scmp.eq.s32.totalorder %s20, 0
    %p228 = por %p226, %p227
    %s229 = smul.u32 %s21, 2
    %s230 = sadd.s32 %s229, %s22
    %s231 = smul.u32 %s33, 2
    %s232 = sadd.s32 %s231, %s29
    %s233 = ssub.s32 %s230, %s232
    %p234 = scmp.eq.s32.totalorder %s233, 0
    %s236 = sadd.s32 %s235, 1
    %s237 = scalar_select %p234, %s235, %s236
    %p240 = pneg %p234
    %p241 = scmp.eq.s32.totalorder %s14, 3
    %p242 = por %p240, %p241
    %p243 = scmp.ne.s32.totalorder %s235, %s238
    %p244 = scmp.eq.s32.totalorder %s14, 0
    %p245 = por %p243, %p244
    %p246 = scmp.ne.s32.totalorder %s235, %s238
    %p247 = scmp.eq.s32.totalorder %s19, 3
    %p248 = por %p246, %p247
    %p249 = scmp.ne.s32.totalorder %s238, %s239
    %p250 = scmp.eq.s32.totalorder %s19, 0
    %p251 = por %p249, %p250
    %p252 = scmp.ne.s32.totalorder %s238, %s239
    %p253 = scmp.eq.s32.totalorder %s20, 3
    %p254 = por %p252, %p253
    %p256 = scmp.ne.s32.totalorder %s239, %s255
    %p257 = scmp.eq.s32.totalorder %s20, 0
    %p258 = por %p256, %p257
    %p259 = scmp.le.s32.totalorder 1, %s14
    %p260 = scmp.lt.s32.totalorder %s14, 5
    %p261 = pnand %p259, %p260
    %p262 = pneg %p261
    // Predicated region
    $region9: #{double_conv_forward.4} parent=5 // pred_check
      _
    $region10: #{double_conv_forward.4} parent=5 // pred_check_branch
      %264 = sbr.rel (%p261) target = $region12
    $region11: #{double_conv_forward.4} parent=5 // pred_region
      %s265 = ssub.s32 %s14, 1
      // Predicated region
      $region13: #{double_conv_forward.4} parent=11 // pred_check
        %p266 = pneg %p149
      $region14: #{double_conv_forward.4} parent=11 // pred_check_branch
        %268 = sbr.rel (%p266) target = $region16
      $region15: #{double_conv_forward.4} parent=11 // pred_region
        _
      $region16: #{double_conv_forward.4} parent=11 // pred_fallthru
        _
      // Predicated region
      $region17: #{double_conv_forward.4} parent=11 // pred_check
        %p269 = pneg %p170
      $region18: #{double_conv_forward.4} parent=11 // pred_check_branch
        %271 = sbr.rel (%p269) target = $region20
      $region19: #{double_conv_forward.4} parent=11 // pred_region
        _
      $region20: #{double_conv_forward.4} parent=11 // pred_fallthru
        _
      // Predicated region
      $region21: #{double_conv_forward.4} parent=11 // pred_check
        %p272 = pneg %p191
      $region22: #{double_conv_forward.4} parent=11 // pred_check_branch
        %274 = sbr.rel (%p272) target = $region24
      $region23: #{double_conv_forward.4} parent=11 // pred_region
        _
      $region24: #{double_conv_forward.4} parent=11 // pred_fallthru
        _
    $region12: #{double_conv_forward.4} parent=5 // pred_fallthru
      _
    %p275 = scmp.lt.s32.totalorder %s14, 4
    // Predicated region
    $region25: #{double_conv_forward.4} parent=5 // pred_check
      %p276 = pneg %p275
    $region26: #{double_conv_forward.4} parent=5 // pred_check_branch
      %278 = sbr.rel (%p276) target = $region28
    $region27: #{double_conv_forward.4} parent=5 // pred_region
      // Predicated region
      $region29: #{double_conv_forward.4} parent=27 // pred_check
        %p279 = pneg %p56
      $region30: #{double_conv_forward.4} parent=27 // pred_check_branch
        %281 = sbr.rel (%p279) target = $region32
      $region31: #{double_conv_forward.4} parent=27 // pred_region
        %s282 = smul.u32 %s21, 2
        %s283 = sadd.s32 %s282, %s22
        %s284 = ssub.s32 %s283, 1
        %p285 = scmp.gt.s32.totalorder %s284, 0
        %s286 = scalar_select %p285, %s284, 0
        %p287 = scmp.lt.s32.totalorder %s286, 3
        %s288 = scalar_select %p287, %s286, 3
        %s289 = smul.addr %s288, 8
        %s290 = scalar_lea.vmem %s0, %s289
        %s291 = smul.u32 %s21, 2
        %s292 = sadd.s32 %s291, %s22
        %s293 = ssub.s32 %s292, 1
        %p294 = scmp.gt.s32.totalorder %s293, 0
        %s295 = scalar_select %p294, %s293, 0
      $region32: #{double_conv_forward.4} parent=27 // pred_fallthru
        _
      // Predicated region
      $region33: #{double_conv_forward.4} parent=27 // pred_check
        %p296 = pneg %p86
      $region34: #{double_conv_forward.4} parent=27 // pred_check_branch
        %298 = sbr.rel (%p296) target = $region36
      $region35: #{double_conv_forward.4} parent=27 // pred_region
        %s299 = smul.u32 %s21, 2
        %s300 = sadd.s32 %s299, %s22
        %p301 = scmp.lt.s32.totalorder %s300, 3
        %s302 = scalar_select %p301, %s300, 3
        %s303 = smul.addr %s302, 8
        %s304 = scalar_lea.vmem %s1, %s303
        %s305 = smul.u32 %s21, 2
        %s306 = sadd.s32 %s305, %s22
      $region36: #{double_conv_forward.4} parent=27 // pred_fallthru
        _
      // Predicated region
      $region37: #{double_conv_forward.4} parent=27 // pred_check
        %p307 = pneg %p122
      $region38: #{double_conv_forward.4} parent=27 // pred_check_branch
        %309 = sbr.rel (%p307) target = $region40
      $region39: #{double_conv_forward.4} parent=27 // pred_region
        %s310 = smul.u32 %s21, 2
        %s311 = sadd.s32 %s310, %s22
        %s312 = sadd.s32 %s311, 1
        %p313 = scmp.lt.s32.totalorder %s312, 3
        %s314 = scalar_select %p313, %s312, 3
        %p315 = scmp.lt.s32.totalorder %s314, 3
        %s316 = scalar_select %p315, %s314, 3
        %s317 = smul.addr %s316, 8
        %s318 = scalar_lea.vmem %s2, %s317
        %s319 = smul.u32 %s21, 2
        %s320 = sadd.s32 %s319, %s22
        %s321 = sadd.s32 %s320, 1
        %p322 = scmp.lt.s32.totalorder %s321, 3
        %s323 = scalar_select %p322, %s321, 3
      $region40: #{double_conv_forward.4} parent=27 // pred_fallthru
        _
    $region28: #{double_conv_forward.4} parent=5 // pred_fallthru
      _
    %p324 = scmp.le.s32.totalorder 1, %s14
    %p325 = scmp.lt.s32.totalorder %s14, 5
    %p326 = pnand %p324, %p325
    %p327 = pneg %p326
    // Predicated region
    $region41: #{double_conv_forward.4} parent=5 // pred_check
      _
    $region42: #{double_conv_forward.4} parent=5 // pred_check_branch
      %329 = sbr.rel (%p326) target = $region44
    $region43: #{double_conv_forward.4} parent=5 // pred_region
      %s330 = ssub.s32 %s14, 1
      %s331 = smul.u32 %s23, 2
      %s332 = sadd.s32 %s331, %s24
      %s333 = ssub.s32 %s332, 1
      %p334 = scmp.gt.s32.totalorder %s333, 0
      %s335 = scalar_select %p334, %s333, 0
      %p336 = scmp.lt.s32.totalorder %s335, 3
      %s337 = scalar_select %p336, %s335, 3
      %s338 = smul.addr %s337, 8
      %s339 = scalar_lea.vmem %s0, %s338
      %p340 = pneg %p62
      %p341 = pneg %p59
      %s342 = smul.u32 %s23, 2
      %s343 = sadd.s32 %s342, %s24
      %p344 = scmp.lt.s32.totalorder %s343, 3
      %s345 = scalar_select %p344, %s343, 3
      %s346 = smul.addr %s345, 8
      %s347 = scalar_lea.vmem %s1, %s346
      %p348 = pneg %p92
      %p349 = pneg %p89
      %s350 = smul.u32 %s23, 2
      %s351 = sadd.s32 %s350, %s24
      %s352 = sadd.s32 %s351, 1
      %p353 = scmp.lt.s32.totalorder %s352, 3
      %s354 = scalar_select %p353, %s352, 3
      %p355 = scmp.lt.s32.totalorder %s354, 3
      %s356 = scalar_select %p355, %s354, 3
      %s357 = smul.addr %s356, 8
      %s358 = scalar_lea.vmem %s2, %s357
      %p359 = pneg %p128
      %p360 = pneg %p125
      %p361 = pneg %p149
      %p362 = pneg %p146
      %p363 = pneg %p170
      %p364 = pneg %p167
      %p365 = pneg %p191
      %p366 = pneg %p188
      %p367 = pneg %p221
      %p368 = pneg %p218
      %s369 = smul.u32 %s23, 2
      %s370 = sadd.s32 %s369, %s24
      %p371 = scmp.lt.s32.totalorder %s370, 3
      %s372 = scalar_select %p371, %s370, 3
      %s373 = smul.addr %s372, 8
      %s374 = scalar_lea.vmem %s6, %s373
      %p375 = pneg %p251
      %p376 = pneg %p248
      %s377 = smul.u32 %s23, 2
      %s378 = sadd.s32 %s377, %s24
      %p379 = scmp.lt.s32.totalorder %s378, 3
      %s380 = scalar_select %p379, %s378, 3
      %s381 = smul.addr %s380, 2
      %s382 = scalar_lea.vmem %s7, %s381
      %s383 = smul.u32 %s23, 2
      %s384 = sadd.s32 %s383, %s24
      %s385 = ssub.s32 %s384, 1
      %p386 = scmp.gt.s32.totalorder %s385, 0
      %s387 = scalar_select %p386, %s385, 0
      %p388 = scmp.lt.s32.totalorder %s387, 3
      %s389 = scalar_select %p388, %s387, 3
      %s390 = smul.addr %s389, 8
      %s391 = scalar_lea.vmem %s0, %s390
      %s392 = smul.u32 %s23, 2
      %s393 = sadd.s32 %s392, %s24
      %s394 = ssub.s32 %s393, 1
      %p395 = scmp.gt.s32.totalorder %s394, 0
      %s396 = scalar_select %p395, %s394, 0
      %s397 = smul.u32 %s23, 2
      %s398 = sadd.s32 %s397, %s24
      %p399 = scmp.lt.s32.totalorder %s398, 3
      %s400 = scalar_select %p399, %s398, 3
      %s401 = smul.addr %s400, 8
      %s402 = scalar_lea.vmem %s1, %s401
      %s403 = smul.u32 %s23, 2
      %s404 = sadd.s32 %s403, %s24
      %s405 = smul.u32 %s23, 2
      %s406 = sadd.s32 %s405, %s24
      %s407 = sadd.s32 %s406, 1
      %p408 = scmp.lt.s32.totalorder %s407, 3
      %s409 = scalar_select %p408, %s407, 3
      %p410 = scmp.lt.s32.totalorder %s409, 3
      %s411 = scalar_select %p410, %s409, 3
      %s412 = smul.addr %s411, 8
      %s413 = scalar_lea.vmem %s2, %s412
      %s414 = smul.u32 %s23, 2
      %s415 = sadd.s32 %s414, %s24
      %s416 = sadd.s32 %s415, 1
      %p417 = scmp.lt.s32.totalorder %s416, 3
      %s418 = scalar_select %p417, %s416, 3
      %s419 = smul.u32 %s23, 2
      %s420 = sadd.s32 %s419, %s24
      %p421 = scmp.lt.s32.totalorder %s420, 3
      %s422 = scalar_select %p421, %s420, 3
      %s423 = smul.addr %s422, 8
      %s424 = scalar_lea.vmem %s6, %s423
      %s425 = smul.u32 %s23, 2
      %s426 = sadd.s32 %s425, %s24
      %s427 = smul.u32 %s23, 2
      %s428 = sadd.s32 %s427, %s24
      %p429 = scmp.lt.s32.totalorder %s428, 3
      %s430 = scalar_select %p429, %s428, 3
      %s431 = smul.addr %s430, 2
      %s432 = scalar_lea.vmem %s7, %s431
      %s433 = smul.u32 %s23, 2
      %s434 = sadd.s32 %s433, %s24
      %p435 = scmp.eq.s32.totalorder %s24, 0
      %v436 = vld [vmem:[%s391 + $0x7] sm:$0x1]
      %v437 = vld [vmem:[%s4] sm:$0x1]
      %v438 = vmul.f32 %v436, %v437
      %v439 = vld [vmem:[%s5] sm:$0x1]
      %v440 = vadd.f32 %v438, %v439
      %v441 = vmax.f32 %v440, 0.0
      %s442 = scalar_select %p435, 1, 0
      %v443 = vstv %s442
      %vm444 = vcmp.eq.s32.totalorder %v443, 1
      %v445 = vsel %vm444, 0.0, %v441
      %p446 = scmp.eq.s32.totalorder %s24, 1
      %v447 = vld [vmem:[%s413] sm:$0x1]
      %v448 = vmul.f32 %v447, %v437
      %v449 = vadd.f32 %v448, %v439
      %v450 = vmax.f32 %v449, 0.0
      %s451 = scalar_select %p446, 1, 0
      %v452 = vstv %s451
      %vm453 = vcmp.eq.s32.totalorder %v452, 1
      %v454 = vsel %vm453, 0.0, %v450
      %v455 = vld [vmem:[%s402] sm:$0xff]
      %v457 = vlaneseq
      %v458 = vshrl.u32 %v457, 7
      %v459 = vsub.s32 0, %v458
      %v460 = vrot.slane %v437, %v459
      %v462 = vmul.f32 %v455, %v460
      %v464 = vlaneseq
      %v465 = vshrl.u32 %v464, 7
      %v466 = vsub.s32 0, %v465
      %v467 = vrot.slane %v439, %v466
      %v469 = vadd.f32 %v462, %v467
      %v470 = vmax.f32 %v469, 0.0
      %v472 = vrot.slane %v470, 7
      %v475 = vrot.slane %v454, 7
      %vm477 = vcmask 1040384
      %v478 = vsel %vm477, %v445, %v472
      %v479 = vsel %vm477, %v472, %v475
      %v480 = vld [vmem:[%s3] sm:$0xff]
      %v481 = vld [vmem:[%s3 + $0x8] sm:$0xff]
      %v482 = vld [vmem:[%s3 + $0x10] sm:$0xff]
      %v483 = vld [vmem:[%s3 + $0x18] sm:$0xff]
      %v484 = vld [vmem:[%s3 + $0x20] sm:$0xff]
      %v485 = vld [vmem:[%s3 + $0x28] sm:$0xff]
      %v486 = vld [vmem:[%s3 + $0x30] sm:$0xff]
      %v487 = vld [vmem:[%s3 + $0x38] sm:$0xff]
      %v488 = vld [vmem:[%s3 + $0x40] sm:$0xff]
      %v489 = vld [vmem:[%s3 + $0x48] sm:$0xff]
      %v490 = vld [vmem:[%s3 + $0x50] sm:$0xff]
      %v491 = vld [vmem:[%s3 + $0x58] sm:$0xff]
      %v492 = vld [vmem:[%s3 + $0x60] sm:$0xff]
      %v493 = vld [vmem:[%s3 + $0x68] sm:$0xff]
      %v494 = vld [vmem:[%s3 + $0x70] sm:$0xff]
      %v495 = vld [vmem:[%s3 + $0x78] sm:$0xff]
      %s496 = scalar_lea.vmem %s3, 128
      %v497 = vld [vmem:[%s496] sm:$0xff]
      %v498 = vld [vmem:[%s496 + $0x8] sm:$0xff]
      %v499 = vld [vmem:[%s496 + $0x10] sm:$0xff]
      %v500 = vld [vmem:[%s496 + $0x18] sm:$0xff]
      %v501 = vld [vmem:[%s496 + $0x20] sm:$0xff]
      %v502 = vld [vmem:[%s496 + $0x28] sm:$0xff]
      %v503 = vld [vmem:[%s496 + $0x30] sm:$0xff]
      %v504 = vld [vmem:[%s496 + $0x38] sm:$0xff]
      %v505 = vld [vmem:[%s496 + $0x40] sm:$0xff]
      %v506 = vld [vmem:[%s496 + $0x48] sm:$0xff]
      %v507 = vld [vmem:[%s496 + $0x50] sm:$0xff]
      %v508 = vld [vmem:[%s496 + $0x58] sm:$0xff]
      %v509 = vld [vmem:[%s496 + $0x60] sm:$0xff]
      %v510 = vld [vmem:[%s496 + $0x68] sm:$0xff]
      %v511 = vld [vmem:[%s496 + $0x70] sm:$0xff]
      %v512 = vld [vmem:[%s496 + $0x78] sm:$0xff]
      %vm515 = vcmask 1046528
      %v516 = vrot.slane %v478, 1
      %v517 = vrot.slane %v479, 1
      %v518 = vsel %vm515, %v516, %v517
      %520 = vmatprep.subr.mxu0 0.0
      %521 = vmatpush1.msra.mxu0 %v512
      %522 = vmatprep.subr.mxu0 0.0
      %523 = vmatpush1.msra.mxu0 %v511
      %524 = vmatprep.subr.mxu0 0.0
      %525 = vmatpush1.msra.mxu0 %v510
      %526 = vmatprep.subr.mxu0 0.0
      %527 = vmatpush1.msra.mxu0 %v509
      %528 = vmatprep.subr.mxu0 0.0
      %529 = vmatpush1.msra.mxu0 %v508
      %530 = vmatprep.subr.mxu0 0.0
      %531 = vmatpush1.msra.mxu0 %v507
      %532 = vmatprep.subr.mxu0 0.0
      %533 = vmatpush1.msra.mxu0 %v506
      %534 = vmatprep.subr.mxu0 0.0
      %535 = vmatpush1.msra.mxu0 %v505
      %536 = vmatprep.subr.mxu0 0.0
      %537 = vmatpush1.msra.mxu0 %v504
      %538 = vmatprep.subr.mxu0 0.0
      %539 = vmatpush1.msra.mxu0 %v503
      %540 = vmatprep.subr.mxu0 0.0
      %541 = vmatpush1.msra.mxu0 %v502
      %542 = vmatprep.subr.mxu0 0.0
      %543 = vmatpush1.msra.mxu0 %v501
      %544 = vmatprep.subr.mxu0 0.0
      %545 = vmatpush1.msra.mxu0 %v500
      %546 = vmatprep.subr.mxu0 0.0
      %547 = vmatpush1.msra.mxu0 %v499
      %548 = vmatprep.subr.mxu0 0.0
      %549 = vmatpush1.msra.mxu0 %v498
      %550 = vmatprep.subr.mxu0 0.0
      %551 = vmatpush1.msra.mxu0 %v497
      %552 = vmatprep.subr.mxu0 0.0
      %553 = vmatpush2.msra.mxu0 0.0
      %554 = vmatprep.subr.mxu0 0.0
      %555 = vmatpush2.msra.mxu0 0.0
      %556 = vmatprep.subr.mxu0 0.0
      %557 = vmatpush2.msra.mxu0 0.0
      %558 = vmatprep.subr.mxu0 0.0
      %559 = vmatpush2.msra.mxu0 0.0
      %560 = vmatprep.subr.mxu0 0.0
      %561 = vmatpush2.msra.mxu0 0.0
      %562 = vmatprep.subr.mxu0 0.0
      %563 = vmatpush2.msra.mxu0 0.0
      %564 = vmatprep.subr.mxu0 0.0
      %565 = vmatpush2.msra.mxu0 0.0
      %566 = vmatprep.subr.mxu0 0.0
      %567 = vmatpush2.msra.mxu0 0.0
      %568 = vmatprep.subr.mxu0 0.0
      %569 = vmatpush2.msra.mxu0 0.0
      %570 = vmatprep.subr.mxu0 0.0
      %571 = vmatpush2.msra.mxu0 0.0
      %572 = vmatprep.subr.mxu0 0.0
      %573 = vmatpush2.msra.mxu0 0.0
      %574 = vmatprep.subr.mxu0 0.0
      %575 = vmatpush2.msra.mxu0 0.0
      %576 = vmatprep.subr.mxu0 0.0
      %577 = vmatpush2.msra.mxu0 0.0
      %578 = vmatprep.subr.mxu0 0.0
      %579 = vmatpush2.msra.mxu0 0.0
      %580 = vmatprep.subr.mxu0 0.0
      %581 = vmatpush2.msra.mxu0 0.0
      %582 = vmatprep.subr.mxu0 0.0
      %583 = vmatpush2.msra.mxu0 0.0
      %584 = vmatprep.mubr.f32.mxu0 0.0
      %585 = vmatmul.mubr.f32.gmra.mxu0 %v518
      %v586 = vpop.f32.mrf.mxu0
      %v587 = vadd.f32 0.0, %v586
      %v588 = vpop.f32.mrf.mxu0
      %589 = vdwg.mxu0
      %590 = vmatprep.subr.mxu0 0.0
      %591 = vmatpush1.msra.mxu0 %v495
      %592 = vmatprep.subr.mxu0 0.0
      %593 = vmatpush1.msra.mxu0 %v494
      %594 = vmatprep.subr.mxu0 0.0
      %595 = vmatpush1.msra.mxu0 %v493
      %596 = vmatprep.subr.mxu0 0.0
      %597 = vmatpush1.msra.mxu0 %v492
      %598 = vmatprep.subr.mxu0 0.0
      %599 = vmatpush1.msra.mxu0 %v491
      %600 = vmatprep.subr.mxu0 0.0
      %601 = vmatpush1.msra.mxu0 %v490
      %602 = vmatprep.subr.mxu0 0.0
      %603 = vmatpush1.msra.mxu0 %v489
      %604 = vmatprep.subr.mxu0 0.0
      %605 = vmatpush1.msra.mxu0 %v488
      %606 = vmatprep.subr.mxu0 0.0
      %607 = vmatpush1.msra.mxu0 %v487
      %608 = vmatprep.subr.mxu0 0.0
      %609 = vmatpush1.msra.mxu0 %v486
      %610 = vmatprep.subr.mxu0 0.0
      %611 = vmatpush1.msra.mxu0 %v485
      %612 = vmatprep.subr.mxu0 0.0
      %613 = vmatpush1.msra.mxu0 %v484
      %614 = vmatprep.subr.mxu0 0.0
      %615 = vmatpush1.msra.mxu0 %v483
      %616 = vmatprep.subr.mxu0 0.0
      %617 = vmatpush1.msra.mxu0 %v482
      %618 = vmatprep.subr.mxu0 0.0
      %619 = vmatpush1.msra.mxu0 %v481
      %620 = vmatprep.subr.mxu0 0.0
      %621 = vmatpush1.msra.mxu0 %v480
      %622 = vmatprep.subr.mxu0 0.0
      %623 = vmatpush2.msra.mxu0 0.0
      %624 = vmatprep.subr.mxu0 0.0
      %625 = vmatpush2.msra.mxu0 0.0
      %626 = vmatprep.subr.mxu0 0.0
      %627 = vmatpush2.msra.mxu0 0.0
      %628 = vmatprep.subr.mxu0 0.0
      %629 = vmatpush2.msra.mxu0 0.0
      %630 = vmatprep.subr.mxu0 0.0
      %631 = vmatpush2.msra.mxu0 0.0
      %632 = vmatprep.subr.mxu0 0.0
      %633 = vmatpush2.msra.mxu0 0.0
      %634 = vmatprep.subr.mxu0 0.0
      %635 = vmatpush2.msra.mxu0 0.0
      %636 = vmatprep.subr.mxu0 0.0
      %637 = vmatpush2.msra.mxu0 0.0
      %638 = vmatprep.subr.mxu0 0.0
      %639 = vmatpush2.msra.mxu0 0.0
      %640 = vmatprep.subr.mxu0 0.0
      %641 = vmatpush2.msra.mxu0 0.0
      %642 = vmatprep.subr.mxu0 0.0
      %643 = vmatpush2.msra.mxu0 0.0
      %644 = vmatprep.subr.mxu0 0.0
      %645 = vmatpush2.msra.mxu0 0.0
      %646 = vmatprep.subr.mxu0 0.0
      %647 = vmatpush2.msra.mxu0 0.0
      %648 = vmatprep.subr.mxu0 0.0
      %649 = vmatpush2.msra.mxu0 0.0
      %650 = vmatprep.subr.mxu0 0.0
      %651 = vmatpush2.msra.mxu0 0.0
      %652 = vmatprep.subr.mxu0 0.0
      %653 = vmatpush2.msra.mxu0 0.0
      %654 = vmatprep.mubr.f32.mxu0 0.0
      %655 = vmatmul.mubr.f32.gmra.mxu0 %v478
      %v656 = vpop.f32.mrf.mxu0
      %v657 = vadd.f32 %v587, %v656
      %v658 = vpop.f32.mrf.mxu0
      %659 = vdwg.mxu0
      %s660 = scalar_lea.vmem %s3, 256
      %v661 = vld [vmem:[%s660] sm:$0xff]
      %v662 = vld [vmem:[%s660 + $0x8] sm:$0xff]
      %v663 = vld [vmem:[%s660 + $0x10] sm:$0xff]
      %v664 = vld [vmem:[%s660 + $0x18] sm:$0xff]
      %v665 = vld [vmem:[%s660 + $0x20] sm:$0xff]
      %v666 = vld [vmem:[%s660 + $0x28] sm:$0xff]
      %v667 = vld [vmem:[%s660 + $0x30] sm:$0xff]
      %v668 = vld [vmem:[%s660 + $0x38] sm:$0xff]
      %v669 = vld [vmem:[%s660 + $0x40] sm:$0xff]
      %v670 = vld [vmem:[%s660 + $0x48] sm:$0xff]
      %v671 = vld [vmem:[%s660 + $0x50] sm:$0xff]
      %v672 = vld [vmem:[%s660 + $0x58] sm:$0xff]
      %v673 = vld [vmem:[%s660 + $0x60] sm:$0xff]
      %v674 = vld [vmem:[%s660 + $0x68] sm:$0xff]
      %v675 = vld [vmem:[%s660 + $0x70] sm:$0xff]
      %v676 = vld [vmem:[%s660 + $0x78] sm:$0xff]
      %vm677 = vcmask 1045504
      %v678 = vrot.slane %v478, 2
      %v679 = vrot.slane %v479, 2
      %v680 = vsel %vm677, %v678, %v679
      %682 = vmatprep.subr.mxu0 0.0
      %683 = vmatpush1.msra.mxu0 %v676
      %684 = vmatprep.subr.mxu0 0.0
      %685 = vmatpush1.msra.mxu0 %v675
      %686 = vmatprep.subr.mxu0 0.0
      %687 = vmatpush1.msra.mxu0 %v674
      %688 = vmatprep.subr.mxu0 0.0
      %689 = vmatpush1.msra.mxu0 %v673
      %690 = vmatprep.subr.mxu0 0.0
      %691 = vmatpush1.msra.mxu0 %v672
      %692 = vmatprep.subr.mxu0 0.0
      %693 = vmatpush1.msra.mxu0 %v671
      %694 = vmatprep.subr.mxu0 0.0
      %695 = vmatpush1.msra.mxu0 %v670
      %696 = vmatprep.subr.mxu0 0.0
      %697 = vmatpush1.msra.mxu0 %v669
      %698 = vmatprep.subr.mxu0 0.0
      %699 = vmatpush1.msra.mxu0 %v668
      %700 = vmatprep.subr.mxu0 0.0
      %701 = vmatpush1.msra.mxu0 %v667
      %702 = vmatprep.subr.mxu0 0.0
      %703 = vmatpush1.msra.mxu0 %v666
      %704 = vmatprep.subr.mxu0 0.0
      %705 = vmatpush1.msra.mxu0 %v665
      %706 = vmatprep.subr.mxu0 0.0
      %707 = vmatpush1.msra.mxu0 %v664
      %708 = vmatprep.subr.mxu0 0.0
      %709 = vmatpush1.msra.mxu0 %v663
      %710 = vmatprep.subr.mxu0 0.0
      %711 = vmatpush1.msra.mxu0 %v662
      %712 = vmatprep.subr.mxu0 0.0
      %713 = vmatpush1.msra.mxu0 %v661
      %714 = vmatprep.subr.mxu0 0.0
      %715 = vmatpush2.msra.mxu0 0.0
      %716 = vmatprep.subr.mxu0 0.0
      %717 = vmatpush2.msra.mxu0 0.0
      %718 = vmatprep.subr.mxu0 0.0
      %719 = vmatpush2.msra.mxu0 0.0
      %720 = vmatprep.subr.mxu0 0.0
      %721 = vmatpush2.msra.mxu0 0.0
      %722 = vmatprep.subr.mxu0 0.0
      %723 = vmatpush2.msra.mxu0 0.0
      %724 = vmatprep.subr.mxu0 0.0
      %725 = vmatpush2.msra.mxu0 0.0
      %726 = vmatprep.subr.mxu0 0.0
      %727 = vmatpush2.msra.mxu0 0.0
      %728 = vmatprep.subr.mxu0 0.0
      %729 = vmatpush2.msra.mxu0 0.0
      %730 = vmatprep.subr.mxu0 0.0
      %731 = vmatpush2.msra.mxu0 0.0
      %732 = vmatprep.subr.mxu0 0.0
      %733 = vmatpush2.msra.mxu0 0.0
      %734 = vmatprep.subr.mxu0 0.0
      %735 = vmatpush2.msra.mxu0 0.0
      %736 = vmatprep.subr.mxu0 0.0
      %737 = vmatpush2.msra.mxu0 0.0
      %738 = vmatprep.subr.mxu0 0.0
      %739 = vmatpush2.msra.mxu0 0.0
      %740 = vmatprep.subr.mxu0 0.0
      %741 = vmatpush2.msra.mxu0 0.0
      %742 = vmatprep.subr.mxu0 0.0
      %743 = vmatpush2.msra.mxu0 0.0
      %744 = vmatprep.subr.mxu0 0.0
      %745 = vmatpush2.msra.mxu0 0.0
      %746 = vmatprep.mubr.f32.mxu0 0.0
      %747 = vmatmul.mubr.f32.gmra.mxu0 %v680
      %v748 = vpop.f32.mrf.mxu0
      %v749 = vadd.f32 0.0, %v748
      %v750 = vpop.f32.mrf.mxu0
      %751 = vdwg.mxu0
      %v752 = vadd.f32 %v657, %v749
      %753 = vst [vmem:[%s424] sm:$0xff] %v752
      %v754 = vrot.slane %v752, 4
      %v755 = vadd.f32 %v752, %v754
      %v756 = vrot.slane %v755, 2
      %v757 = vadd.f32 %v755, %v756
      %v758 = vrot.slane %v757, 1
      %v759 = vadd.f32 %v757, %v758
      %v760 = vmul.f32 %v752, %v752
      %v761 = vrot.slane %v760, 4
      %v762 = vadd.f32 %v760, %v761
      %v763 = vrot.slane %v762, 2
      %v764 = vadd.f32 %v762, %v763
      %v765 = vrot.slane %v764, 1
      %v766 = vadd.f32 %v764, %v765
      %v767 = vsel %vm477, %v759, %v766
      %768 = vst [vmem:[%s432] sm:$0x3] %v767
      %s769 = smul.u32 %s23, 2
      %s770 = sadd.s32 %s769, %s24
      %p771 = scmp.lt.s32.totalorder %s770, 3
      %s772 = scalar_select %p771, %s770, 3
      %s773 = smul.addr %s772, 8
      %s774 = scalar_lea.vmem %s6, %s773
      %s775 = smul.u32 %s23, 2
      %s776 = sadd.s32 %s775, %s24
      %p777 = scmp.lt.s32.totalorder %s776, 3
      %s778 = scalar_select %p777, %s776, 3
      %s779 = smul.addr %s778, 2
      %s780 = scalar_lea.vmem %s7, %s779
      // Predicated region
      $region45: #{double_conv_forward.4} parent=43 // pred_check
        %p781 = pneg %p218
      $region46: #{double_conv_forward.4} parent=43 // pred_check_branch
        %783 = sbr.rel (%p781) target = $region48
      $region47: #{double_conv_forward.4} parent=43 // pred_region
        %s784 = smul.u32 %s23, 2
        %s785 = sadd.s32 %s784, %s24
      $region48: #{double_conv_forward.4} parent=43 // pred_fallthru
        _
      // Predicated region
      $region49: #{double_conv_forward.4} parent=43 // pred_check
        %p786 = pneg %p248
      $region50: #{double_conv_forward.4} parent=43 // pred_check_branch
        %788 = sbr.rel (%p786) target = $region52
      $region51: #{double_conv_forward.4} parent=43 // pred_region
        %s789 = smul.u32 %s23, 2
        %s790 = sadd.s32 %s789, %s24
      $region52: #{double_conv_forward.4} parent=43 // pred_fallthru
        _
    $region44: #{double_conv_forward.4} parent=5 // pred_fallthru
      _
    %p791 = scmp.le.s32.totalorder 2, %s14
    // Predicated region
    $region53: #{double_conv_forward.4} parent=5 // pred_check
      %p792 = pneg %p791
    $region54: #{double_conv_forward.4} parent=5 // pred_check_branch
      %794 = sbr.rel (%p792) target = $region56
    $region55: #{double_conv_forward.4} parent=5 // pred_region
      %s795 = ssub.s32 %s14, 2
      // Predicated region
      $region57: #{double_conv_forward.4} parent=55 // pred_check
        %p796 = pneg %p224
      $region58: #{double_conv_forward.4} parent=55 // pred_check_branch
        %798 = sbr.rel (%p796) target = $region60
      $region59: #{double_conv_forward.4} parent=55 // pred_region
        %s799 = smul.u32 %s25, 2
        %s800 = sadd.s32 %s799, %s26
        %p801 = scmp.lt.s32.totalorder %s800, 3
        %s802 = scalar_select %p801, %s800, 3
        %s803 = smul.addr %s802, 8
        %s804 = scalar_lea.vmem %s6, %s803
      $region60: #{double_conv_forward.4} parent=55 // pred_fallthru
        _
      // Predicated region
      $region61: #{double_conv_forward.4} parent=55 // pred_check
        %p805 = pneg %p254
      $region62: #{double_conv_forward.4} parent=55 // pred_check_branch
        %807 = sbr.rel (%p805) target = $region64
      $region63: #{double_conv_forward.4} parent=55 // pred_region
        %s808 = smul.u32 %s25, 2
        %s809 = sadd.s32 %s808, %s26
        %p810 = scmp.lt.s32.totalorder %s809, 3
        %s811 = scalar_select %p810, %s809, 3
        %s812 = smul.addr %s811, 2
        %s813 = scalar_lea.vmem %s7, %s812
      $region64: #{double_conv_forward.4} parent=55 // pred_fallthru
        _
    $region56: #{double_conv_forward.4} parent=5 // pred_fallthru
      _
  $region6: #{double_conv_forward.4} parent=0 // loop_footer
    %s18 = sadd.s32 1, %s14
  $region7: #{double_conv_forward.4} parent=0 // loop_footer_branch
    %13 = sbr.rel target = $region3
  $region8: #{double_conv_forward.4} parent=0 // loop_exit
    _

// kernel: double_conv_forward.5
$region0: #{double_conv_forward.5}
  #allocation0 [shape = 'u32[]', space=smem, size = 0x4, offset = 0x4, fixed_abs, tag = 'smem constant byte address 0x4 - core index']
  #allocation1 [shape = 'u32[144,128]{1,0:T(1,128)}', space=vmem, size = 0x12000, scoped, tag = 'internal scratch']
  %s0 = inlined_call_operand.vmem [shape: f32[32,128], index: 0, kind: input, shape index: {}]
  %s1 = inlined_call_operand.vmem [shape: f32[1,128], index: 1, kind: input, shape index: {}]
  %s2 = inlined_call_operand.vmem [shape: f32[1,128], index: 2, kind: input, shape index: {}]
  %s3 = inlined_call_operand.vmem [shape: f32[32,128], index: 3, kind: output, shape index: {}]
  %s4 = sld [smem:[#allocation0]]
  $region45: #{double_conv_forward.5} parent=0
    _
  %s6 = ssub.s32 1, %s4
  %s7 = scalar_select 0, %s6, %s4
  loop: start=0, step=1, limit=6
  $region2: #{double_conv_forward.5} parent=0 // loop_pre_header
    _
  $region3: #{double_conv_forward.5} parent=0 // loop_header
    %s9 = sphi 0, %s13
    %p10 = scmp.ge.s32.totalorder %s9, 6
    %s19 = sphi 0, %s21
    %s22 = sphi 0, %s19
    %s23 = sphi 0, %s22
    %s39 = sphi 0, %s23
    %s43 = sphi 0, %s43
    %s45 = sphi 0, %s43
    %s46 = sphi 0, %s45
    %s60 = sphi 0, %s46
    %s64 = sphi 0, %s64
    %s66 = sphi 0, %s64
    %s67 = sphi 0, %s66
    %s81 = sphi 0, %s67
    %s87 = sphi 0, %s89
    %s90 = sphi 0, %s87
    %s91 = sphi 0, %s90
    %s107 = sphi 0, %s91
  $region4: #{double_conv_forward.5} parent=0 // loop_header_branch
    %12 = sbr.rel (%p10) target = $region8
  $region5: #{double_conv_forward.5} parent=0 // loop_body
    %s14 = ssub.s32 %s9, 1
    %s15 = ssub.s32 %s9, 2
    %s16 = sadd.s32 %s9, 1
    %s17 = ssub.s32 %s9, %s16
    %p18 = scmp.eq.s32.totalorder %s17, 0
    %s20 = sadd.s32 %s19, 1
    %s21 = scalar_select %p18, %s19, %s20
    %p24 = pneg %p18
    %p25 = scmp.eq.s32.totalorder %s9, 3
    %p26 = por %p24, %p25
    %p27 = scmp.ne.s32.totalorder %s19, %s22
    %p28 = scmp.eq.s32.totalorder %s9, 0
    %p29 = por %p27, %p28
    %p30 = scmp.ne.s32.totalorder %s19, %s22
    %p31 = scmp.eq.s32.totalorder %s14, 3
    %p32 = por %p30, %p31
    %p33 = scmp.ne.s32.totalorder %s22, %s23
    %p34 = scmp.eq.s32.totalorder %s14, 0
    %p35 = por %p33, %p34
    %p36 = scmp.ne.s32.totalorder %s22, %s23
    %p37 = scmp.eq.s32.totalorder %s15, 3
    %p38 = por %p36, %p37
    %p40 = scmp.ne.s32.totalorder %s23, %s39
    %p41 = scmp.eq.s32.totalorder %s15, 0
    %p42 = por %p40, %p41
    %s44 = sadd.s32 %s43, 1
    %p47 = scmp.eq.s32.totalorder %s9, 3
    %p48 = scmp.ne.s32.totalorder %s43, %s45
    %p49 = scmp.eq.s32.totalorder %s9, 0
    %p50 = por %p48, %p49
    %p51 = scmp.ne.s32.totalorder %s43, %s45
    %p52 = scmp.eq.s32.totalorder %s14, 3
    %p53 = por %p51, %p52
    %p54 = scmp.ne.s32.totalorder %s45, %s46
    %p55 = scmp.eq.s32.totalorder %s14, 0
    %p56 = por %p54, %p55
    %p57 = scmp.ne.s32.totalorder %s45, %s46
    %p58 = scmp.eq.s32.totalorder %s15, 3
    %p59 = por %p57, %p58
    %p61 = scmp.ne.s32.totalorder %s46, %s60
    %p62 = scmp.eq.s32.totalorder %s15, 0
    %p63 = por %p61, %p62
    %s65 = sadd.s32 %s64, 1
    %p68 = scmp.eq.s32.totalorder %s9, 3
    %p69 = scmp.ne.s32.totalorder %s64, %s66
    %p70 = scmp.eq.s32.totalorder %s9, 0
    %p71 = por %p69, %p70
    %p72 = scmp.ne.s32.totalorder %s64, %s66
    %p73 = scmp.eq.s32.totalorder %s14, 3
    %p74 = por %p72, %p73
    %p75 = scmp.ne.s32.totalorder %s66, %s67
    %p76 = scmp.eq.s32.totalorder %s14, 0
    %p77 = por %p75, %p76
    %p78 = scmp.ne.s32.totalorder %s66, %s67
    %p79 = scmp.eq.s32.totalorder %s15, 3
    %p80 = por %p78, %p79
    %p82 = scmp.ne.s32.totalorder %s67, %s81
    %p83 = scmp.eq.s32.totalorder %s15, 0
    %p84 = por %p82, %p83
    %s85 = ssub.s32 %s9, %s16
    %p86 = scmp.eq.s32.totalorder %s85, 0
    %s88 = sadd.s32 %s87, 1
    %s89 = scalar_select %p86, %s87, %s88
    %p92 = pneg %p86
    %p93 = scmp.eq.s32.totalorder %s9, 3
    %p94 = por %p92, %p93
    %p95 = scmp.ne.s32.totalorder %s87, %s90
    %p96 = scmp.eq.s32.totalorder %s9, 0
    %p97 = por %p95, %p96
    %p98 = scmp.ne.s32.totalorder %s87, %s90
    %p99 = scmp.eq.s32.totalorder %s14, 3
    %p100 = por %p98, %p99
    %p101 = scmp.ne.s32.totalorder %s90, %s91
    %p102 = scmp.eq.s32.totalorder %s14, 0
    %p103 = por %p101, %p102
    %p104 = scmp.ne.s32.totalorder %s90, %s91
    %p105 = scmp.eq.s32.totalorder %s15, 3
    %p106 = por %p104, %p105
    %p108 = scmp.ne.s32.totalorder %s91, %s107
    %p109 = scmp.eq.s32.totalorder %s15, 0
    %p110 = por %p108, %p109
    %p111 = scmp.le.s32.totalorder 1, %s9
    %p112 = scmp.lt.s32.totalorder %s9, 5
    %p113 = pnand %p111, %p112
    %p114 = pneg %p113
    // Predicated region
    $region9: #{double_conv_forward.5} parent=5 // pred_check
      _
    $region10: #{double_conv_forward.5} parent=5 // pred_check_branch
      %116 = sbr.rel (%p113) target = $region12
    $region11: #{double_conv_forward.5} parent=5 // pred_region
      %s117 = ssub.s32 %s9, 1
      // Predicated region
      $region13: #{double_conv_forward.5} parent=11 // pred_check
        %p118 = pneg %p56
      $region14: #{double_conv_forward.5} parent=11 // pred_check_branch
        %120 = sbr.rel (%p118) target = $region16
      $region15: #{double_conv_forward.5} parent=11 // pred_region
        _
      $region16: #{double_conv_forward.5} parent=11 // pred_fallthru
        _
      // Predicated region
      $region17: #{double_conv_forward.5} parent=11 // pred_check
        %p121 = pneg %p77
      $region18: #{double_conv_forward.5} parent=11 // pred_check_branch
        %123 = sbr.rel (%p121) target = $region20
      $region19: #{double_conv_forward.5} parent=11 // pred_region
        _
      $region20: #{double_conv_forward.5} parent=11 // pred_fallthru
        _
    $region12: #{double_conv_forward.5} parent=5 // pred_fallthru
      _
    %p124 = scmp.lt.s32.totalorder %s9, 4
    // Predicated region
    $region21: #{double_conv_forward.5} parent=5 // pred_check
      %p125 = pneg %p124
    $region22: #{double_conv_forward.5} parent=5 // pred_check_branch
      %127 = sbr.rel (%p125) target = $region24
    $region23: #{double_conv_forward.5} parent=5 // pred_region
      // Predicated region
      $region25: #{double_conv_forward.5} parent=23 // pred_check
        %p128 = pneg %p29
      $region26: #{double_conv_forward.5} parent=23 // pred_check_branch
        %130 = sbr.rel (%p128) target = $region28
      $region27: #{double_conv_forward.5} parent=23 // pred_region
        %p131 = scmp.lt.s32.totalorder %s9, 3
        %s132 = scalar_select %p131, %s9, 3
        %s133 = smul.addr %s132, 8
        %s134 = scalar_lea.vmem %s0, %s133
      $region28: #{double_conv_forward.5} parent=23 // pred_fallthru
        _
    $region24: #{double_conv_forward.5} parent=5 // pred_fallthru
      _
    %p135 = scmp.le.s32.totalorder 1, %s9
    %p136 = scmp.lt.s32.totalorder %s9, 5
    %p137 = pnand %p135, %p136
    %p138 = pneg %p137
    // Predicated region
    $region29: #{double_conv_forward.5} parent=5 // pred_check
      _
    $region30: #{double_conv_forward.5} parent=5 // pred_check_branch
      %140 = sbr.rel (%p137) target = $region32
    $region31: #{double_conv_forward.5} parent=5 // pred_region
      %s141 = ssub.s32 %s9, 1
      %p142 = scmp.lt.s32.totalorder %s14, 3
      %s143 = scalar_select %p142, %s14, 3
      %s144 = smul.addr %s143, 8
      %s145 = scalar_lea.vmem %s0, %s144
      %p146 = pneg %p35
      %p147 = pneg %p32
      %p148 = pneg %p56
      %p149 = pneg %p53
      %p150 = pneg %p77
      %p151 = pneg %p74
      %p152 = pneg %p103
      %p153 = pneg %p100
      %p154 = scmp.lt.s32.totalorder %s14, 3
      %s155 = scalar_select %p154, %s14, 3
      %s156 = smul.addr %s155, 8
      %s157 = scalar_lea.vmem %s3, %s156
      %p158 = scmp.lt.s32.totalorder %s14, 3
      %s159 = scalar_select %p158, %s14, 3
      %s160 = smul.addr %s159, 8
      %s161 = scalar_lea.vmem %s0, %s160
      %p162 = scmp.lt.s32.totalorder %s14, 3
      %s163 = scalar_select %p162, %s14, 3
      %s164 = smul.addr %s163, 8
      %s165 = scalar_lea.vmem %s3, %s164
      %v166 = vld [vmem:[%s161] sm:$0xff]
      %v167 = vld [vmem:[%s1] sm:$0x1]
      %v169 = vlaneseq
      %v170 = vshrl.u32 %v169, 7
      %v171 = vsub.s32 0, %v170
      %v172 = vrot.slane %v167, %v171
      %v174 = vmul.f32 %v166, %v172
      %v175 = vld [vmem:[%s2] sm:$0x1]
      %v177 = vlaneseq
      %v178 = vshrl.u32 %v177, 7
      %v179 = vsub.s32 0, %v178
      %v180 = vrot.slane %v175, %v179
      %v182 = vadd.f32 %v174, %v180
      %v183 = vmax.f32 %v182, 0.0
      %184 = vst [vmem:[%s165] sm:$0xff] %v183
      %p185 = scmp.lt.s32.totalorder %s14, 3
      %s186 = scalar_select %p185, %s14, 3
      %s187 = smul.addr %s186, 8
      %s188 = scalar_lea.vmem %s3, %s187
      // Predicated region
      $region33: #{double_conv_forward.5} parent=31 // pred_check
        %p189 = pneg %p100
      $region34: #{double_conv_forward.5} parent=31 // pred_check_branch
        %191 = sbr.rel (%p189) target = $region36
      $region35: #{double_conv_forward.5} parent=31 // pred_region
        _
      $region36: #{double_conv_forward.5} parent=31 // pred_fallthru
        _
    $region32: #{double_conv_forward.5} parent=5 // pred_fallthru
      _
    %p192 = scmp.le.s32.totalorder 2, %s9
    // Predicated region
    $region37: #{double_conv_forward.5} parent=5 // pred_check
      %p193 = pneg %p192
    $region38: #{double_conv_forward.5} parent=5 // pred_check_branch
      %195 = sbr.rel (%p193) target = $region40
    $region39: #{double_conv_forward.5} parent=5 // pred_region
      %s196 = ssub.s32 %s9, 2
      // Predicated region
      $region41: #{double_conv_forward.5} parent=39 // pred_check
        %p197 = pneg %p106
      $region42: #{double_conv_forward.5} parent=39 // pred_check_branch
        %199 = sbr.rel (%p197) target = $region44
      $region43: #{double_conv_forward.5} parent=39 // pred_region
        %p200 = scmp.lt.s32.totalorder %s15, 3
        %s201 = scalar_select %p200, %s15, 3
        %s202 = smul.addr %s201, 8
        %s203 = scalar_lea.vmem %s3, %s202
      $region44: #{double_conv_forward.5} parent=39 // pred_fallthru
        _
    $region40: #{double_conv_forward.5} parent=5 // pred_fallthru
      _
  $region6: #{double_conv_forward.5} parent=0 // loop_footer
    %s13 = sadd.s32 1, %s9
  $region7: #{double_conv_forward.5} parent=0 // loop_footer_branch
    %8 = sbr.rel target = $region3
  $region8: #{double_conv_forward.5} parent=0 // loop_exit
    _

</llo_original>
